<compile_context>
chip_gen: v6e
topology: v6e:2x2x1
jax: 0.10.0
libtpu: 0.0.40
codegen_flags: <defaults>
</compile_context>

<pallas_src>
import math

import jax
import jax.numpy as jnp
from jax.experimental import pallas as pl
from jax.experimental.pallas import tpu as pltpu

EPS = 1e-16  # Python float literal inside the kernel (no captured jnp constant)


def npu_nau_kernel(x_ref, w_ref, g_ref, o_ref):
    # x: (tm, in_dim)               input row tile
    # w: (3*in_dim, 4*out_dim)      block-structured fused weight (pi folded in)
    # g: (1, in_dim)                clamp(g, 0, 1), broadcast over rows
    x = x_ref[...]
    w = w_ref[...]
    g_npu = g_ref[...]

    out_dim = w.shape[1] // 4

    # NPU input transforms (VPU / EUP elementwise).
    r = g_npu * (jnp.abs(x) + EPS) + (1.0 - g_npu)
    k = g_npu * (x < 0).astype(jnp.float32)
    logr = jnp.log(r)

    # Single MXU pass against the block-structured weight:
    #   [gate_pre | nau | exp_arg | cos_arg] = [x | logr | k] @ w_fused
    lhs = jnp.concatenate([x, logr, k], axis=1)                   # (tm, 3*in)
    res = jnp.dot(lhs, w, preferred_element_type=jnp.float32,
                  precision=jax.lax.Precision.HIGHEST)            # (tm, 4*out)

    gate = jax.nn.sigmoid(res[:, :out_dim])                       # EUP
    nau = res[:, out_dim:2 * out_dim]
    npu = jnp.exp(res[:, 2 * out_dim:3 * out_dim]) * jnp.cos(res[:, 3 * out_dim:])

    # gate*nau + (1-gate)*npu  ==  npu + gate*(nau - npu)
    o_ref[...] = npu + gate * (nau - npu)


def prepare_npu_nau_params(A, G, W_real, W_im, g):
    """One-time (per parameter update) weight fusion for the NPU_NAU cell.

    Returns:
      w_fused: (3*in_dim, 4*out_dim) block-structured, pi folded into k-rows.
      g_row:   (1, in_dim) clamp(g, 0, 1).
    """
    out_dim, in_dim = A.shape
    # The g broadcast inside the NPU cell implicitly requires this
    # (same constraint as the PyTorch module).
    assert in_dim == out_dim, "NPU_NAU_Cell requires in_dim == out_dim"

    z = jnp.zeros((in_dim, out_dim), jnp.float32)
    A_c = jnp.clip(A, -1.0, 1.0)
    row_x = jnp.concatenate([G.T, A_c.T, z, z], axis=1)
    row_logr = jnp.concatenate([z, z, W_real.T, W_im.T], axis=1)
    row_k = jnp.concatenate([z, z, -math.pi * W_im.T, math.pi * W_real.T], axis=1)
    w_fused = jnp.concatenate([row_x, row_logr, row_k], axis=0)   # (3*in, 4*out)
    g_row = jnp.clip(g, 0.0, 1.0).reshape(1, in_dim)
    return w_fused, g_row


def npu_nau_cell(x_rows, w_fused, g_row, *, tm=64):
    """Apply the NPU_NAU cell to M independent input rows.

    The cell is stateless, so callers should flatten independent timesteps /
    samples (T, B, in_dim) -> (T*B, in_dim): the rows fill the MXU M dimension
    inside one launch instead of paying T separate kernel calls.
    """
    M, in_dim = x_rows.shape
    assert w_fused.shape[0] == 3 * in_dim
    out_dim = w_fused.shape[1] // 4

    n_tiles = pl.cdiv(M, tm)
    Mp = n_tiles * tm
    if Mp != M:
        x_rows = jnp.pad(x_rows, ((0, Mp - M), (0, 0)))

    cost = pl.CostEstimate(
        flops=2 * Mp * (3 * in_dim) * (4 * out_dim),
        transcendentals=Mp * (in_dim + 3 * out_dim),   # log + sigmoid/exp/cos
        bytes_accessed=4 * (Mp * in_dim + 3 * in_dim * 4 * out_dim
                            + in_dim + Mp * out_dim),
    )

    out = pl.pallas_call(
        npu_nau_kernel,
        out_shape=jax.ShapeDtypeStruct((Mp, out_dim), jnp.float32),
        grid=(n_tiles,),
        in_specs=[
            pl.BlockSpec((tm, in_dim), lambda i: (i, 0)),
            # Constant index_maps -> fused weight & g are DMA'd once and stay
            # VMEM-resident across every grid step.
            pl.BlockSpec((3 * in_dim, 4 * out_dim), lambda i: (0, 0)),
            pl.BlockSpec((1, in_dim), lambda i: (0, 0)),
        ],
        out_specs=pl.BlockSpec((tm, out_dim), lambda i: (i, 0)),
        compiler_params=pltpu.CompilerParams(
            dimension_semantics=("parallel",)),  # rows independent -> megacore
        cost_estimate=cost,
    )(x_rows, w_fused, g_row)
    return out[:M]


def xavier_uniform(key, out_dim, in_dim):
    # gain=1.0; limit = sqrt(6 / (fan_in + fan_out))
    limit = math.sqrt(6.0 / (in_dim + out_dim))
    return jax.random.uniform(key, (out_dim, in_dim), jnp.float32, -limit, limit)


def reference(x, A, G, W_real, W_im, g):
    hp = jax.lax.Precision.HIGHEST
    gate = jax.nn.sigmoid(jnp.dot(x, G.T, precision=hp))
    nau = jnp.dot(x, jnp.clip(A, -1.0, 1.0).T, precision=hp)
    gn = jnp.clip(g, 0.0, 1.0)
    r = gn * (jnp.abs(x) + EPS) + (1.0 - gn)
    k = gn * (x < 0).astype(jnp.float32)
    logr = jnp.log(r)
    exp_arg = (jnp.dot(logr, W_real.T, precision=hp)
               - math.pi * jnp.dot(k, W_im.T, precision=hp))
    cos_arg = (jnp.dot(logr, W_im.T, precision=hp)
               + math.pi * jnp.dot(k, W_real.T, precision=hp))
    npu = jnp.exp(exp_arg) * jnp.cos(cos_arg)
    return gate * nau + (1.0 - gate) * npu


if __name__ == "__main__":
    # out_dim must equal in_dim (implicit broadcast constraint of the module).
    T, B, in_dim, out_dim = 16, 8, 32, 32   # 16 independent "timesteps"

    key = jax.random.PRNGKey(0)
    kx, kA, kG, kWr, kWi = jax.random.split(key, 5)

    xs = jax.random.normal(kx, (T, B, in_dim), jnp.float32)
    A = xavier_uniform(kA, out_dim, in_dim)
    G = xavier_uniform(kG, out_dim, in_dim)
    W_real = xavier_uniform(kWr, out_dim, in_dim)
    W_im = xavier_uniform(kWi, out_dim, in_dim)
    g = jnp.full((out_dim,), 0.5, jnp.float32)

    # One-time weight fusion (per parameter update, NOT per forward call).
    w_fused, g_row = prepare_npu_nau_params(A, G, W_real, W_im, g)

    # Stateless cell -> flatten independent timesteps into the matmul M dim.
    x_rows = xs.reshape(T * B, in_dim)
    out = npu_nau_cell(x_rows, w_fused, g_row, tm=64).reshape(T, B, out_dim)
    out = jax.block_until_ready(out)

    ref = reference(x_rows, A, G, W_real, W_im, g).reshape(T, B, out_dim)
    assert out.shape == (T, B, out_dim)
    assert jnp.allclose(out, ref, atol=1e-4, rtol=1e-4), "mismatch vs reference"

    print("KERNEL_OK")
</pallas_src>

<mosaic_0001>
module attributes {stable_mosaic.version = 11 : i64} {
  func.func @npu_nau_kernel(%arg0: i32, %arg1: memref<64x32xf32, #tpu.memory_space<vmem>>, %arg2: memref<96x128xf32, #tpu.memory_space<vmem>>, %arg3: memref<1x32xf32, #tpu.memory_space<vmem>>, %arg4: memref<64x32xf32, #tpu.memory_space<vmem>>) attributes {dimension_semantics = [#tpu.dimension_semantics<parallel>], iteration_bounds = array<i64: 2>, scalar_prefetch = 0 : i64, scratch_operands = 0 : i64, tpu.core_type = #tpu.core_type<tc>, window_params = [{transform_indices = @transform_0, window_bounds = array<i64: 64, 32>}, {pipeline_mode = #tpu.pipeline_mode<synchronous>, transform_indices = @transform_1, window_bounds = array<i64: 96, 128>}, {pipeline_mode = #tpu.pipeline_mode<synchronous>, transform_indices = @transform_2, window_bounds = array<i64: 1, 32>}, {transform_indices = @transform_3, window_bounds = array<i64: 64, 32>}]} {
    %c0 = arith.constant 0 : index
    %c0_0 = arith.constant 0 : index
    %0 = vector.load %arg1[%c0, %c0_0] : memref<64x32xf32, #tpu.memory_space<vmem>>, vector<64x32xf32>
    %c0_1 = arith.constant 0 : index
    %c0_2 = arith.constant 0 : index
    %1 = vector.load %arg2[%c0_1, %c0_2] : memref<96x128xf32, #tpu.memory_space<vmem>>, vector<96x128xf32>
    %c0_3 = arith.constant 0 : index
    %c0_4 = arith.constant 0 : index
    %2 = vector.load %arg3[%c0_3, %c0_4] : memref<1x32xf32, #tpu.memory_space<vmem>>, vector<1x32xf32>
    %3 = math.absf %0 : vector<64x32xf32>
    %cst = arith.constant 1.000000e-16 : f32
    %4 = vector.broadcast %cst : f32 to vector<64x32xf32>
    %5 = arith.addf %3, %4 : vector<64x32xf32>
    %6 = vector.broadcast %2 : vector<1x32xf32> to vector<64x32xf32>
    %7 = arith.mulf %6, %5 : vector<64x32xf32>
    %cst_5 = arith.constant 1.000000e+00 : f32
    %8 = vector.broadcast %cst_5 : f32 to vector<1x32xf32>
    %9 = arith.subf %8, %2 : vector<1x32xf32>
    %10 = vector.broadcast %9 : vector<1x32xf32> to vector<64x32xf32>
    %11 = arith.addf %7, %10 : vector<64x32xf32>
    %cst_6 = arith.constant 0.000000e+00 : f32
    %12 = vector.broadcast %cst_6 : f32 to vector<64x32xf32>
    %13 = arith.cmpf olt, %0, %12 : vector<64x32xf32>
    %14 = arith.extui %13 : vector<64x32xi1> to vector<64x32xi32>
    %15 = arith.sitofp %14 : vector<64x32xi32> to vector<64x32xf32>
    %16 = vector.broadcast %2 : vector<1x32xf32> to vector<64x32xf32>
    %17 = arith.mulf %16, %15 : vector<64x32xf32>
    %18 = math.log %11 : vector<64x32xf32>
    %19 = tpu.concatenate %0, %18, %17 in 1 : vector<64x32xf32>, vector<64x32xf32>, vector<64x32xf32> -> vector<64x96xf32>
    %cst_7 = arith.constant dense<0.000000e+00> : vector<64x128xf32>
    %20 = tpu.matmul %19, %1, %cst_7 {dimension_numbers = #tpu.dot_dimension_numbers<[1], [0], [0], [1], [0, 0, 1, 1], [], []>, precision = #tpu.contract_precision<fp32>} : vector<64x96xf32>, vector<96x128xf32>, vector<64x128xf32> -> vector<64x128xf32>
    %21 = vector.extract_strided_slice %20 {offsets = [0, 0], sizes = [64, 32], strides = [1, 1]} : vector<64x128xf32> to vector<64x32xf32>
    %22 = arith.negf %21 : vector<64x32xf32>
    %23 = math.exp %22 : vector<64x32xf32>
    %cst_8 = arith.constant 1.000000e+00 : f32
    %24 = vector.broadcast %cst_8 : f32 to vector<64x32xf32>
    %25 = arith.addf %24, %23 : vector<64x32xf32>
    %26 = arith.divf %24, %25 : vector<64x32xf32>
    %27 = vector.extract_strided_slice %20 {offsets = [0, 32], sizes = [64, 32], strides = [1, 1]} : vector<64x128xf32> to vector<64x32xf32>
    %28 = vector.extract_strided_slice %20 {offsets = [0, 64], sizes = [64, 32], strides = [1, 1]} : vector<64x128xf32> to vector<64x32xf32>
    %29 = math.exp %28 : vector<64x32xf32>
    %30 = vector.extract_strided_slice %20 {offsets = [0, 96], sizes = [64, 32], strides = [1, 1]} : vector<64x128xf32> to vector<64x32xf32>
    %31 = math.cos %30 : vector<64x32xf32>
    %32 = arith.mulf %29, %31 : vector<64x32xf32>
    %33 = arith.subf %27, %32 : vector<64x32xf32>
    %34 = arith.mulf %26, %33 : vector<64x32xf32>
    %35 = arith.addf %32, %34 : vector<64x32xf32>
    %c0_9 = arith.constant 0 : index
    %c0_10 = arith.constant 0 : index
    %36 = vector.load %arg4[%c0_9, %c0_10] : memref<64x32xf32, #tpu.memory_space<vmem>>, vector<64x32xf32>
    tpu.vector_store %arg4[%c0_9, %c0_10], %35 {strides = array<i32>} : memref<64x32xf32, #tpu.memory_space<vmem>>, vector<64x32xf32>,
    return
  }
  func.func @transform_0(%arg0: i32) -> (i32, i32) {
    %c0_i32 = arith.constant 0 : i32
    %c0_i32_0 = arith.constant 0 : i32
    return %arg0, %c0_i32 : i32, i32
  }
  func.func @transform_1(%arg0: i32) -> (i32, i32) {
    %c0_i32 = arith.constant 0 : i32
    %c0_i32_0 = arith.constant 0 : i32
    %c0_i32_1 = arith.constant 0 : i32
    return %c0_i32, %c0_i32_0 : i32, i32
  }
  func.func @transform_2(%arg0: i32) -> (i32, i32) {
    %c0_i32 = arith.constant 0 : i32
    %c0_i32_0 = arith.constant 0 : i32
    %c0_i32_1 = arith.constant 0 : i32
    return %c0_i32, %c0_i32_0 : i32, i32
  }
  func.func @transform_3(%arg0: i32) -> (i32, i32) {
    %c0_i32 = arith.constant 0 : i32
    %c0_i32_0 = arith.constant 0 : i32
    return %arg0, %c0_i32 : i32, i32
  }
}

</mosaic_0001>

<llo_original>
// kernel: tpu_custom_call.1
$region0: #{tpu_custom_call.1}
  #allocation0 [shape = 'u32[]', space=smem, size = 0x4, offset = 0x4, fixed_abs, tag = 'smem constant byte address 0x4 - core index']
  #allocation1 [shape = 'u32[144,128]{1,0:T(1,128)}', space=vmem, size = 0x12000, scoped, tag = 'internal scratch']
  %s0 = inlined_call_operand.vmem [shape: f32[128,32], index: 0, kind: input, shape index: {}]
  %s1 = inlined_call_operand.vmem [shape: f32[96,128], index: 1, kind: input, shape index: {}]
  %s2 = inlined_call_operand.vmem [shape: f32[1,32], index: 2, kind: input, shape index: {}]
  %s3 = inlined_call_operand.vmem [shape: f32[128,32], index: 3, kind: output, shape index: {}]
  %s4 = sld [smem:[#allocation0]]
  $region45: #{tpu_custom_call.1} parent=0
    _
  %s6 = ssub.s32 1, %s4
  %s7 = scalar_select 0, %s6, %s4
  loop: start=0, step=1, limit=4
  $region2: #{tpu_custom_call.1} parent=0 // loop_pre_header
    _
  $region3: #{tpu_custom_call.1} parent=0 // loop_header
    %s9 = sphi 0, %s13
    %p10 = scmp.ge.s32.totalorder %s9, 4
    %s19 = sphi 0, %s21
    %s22 = sphi 0, %s19
    %s23 = sphi 0, %s22
    %s39 = sphi 0, %s23
    %s43 = sphi 0, %s43
    %s45 = sphi 0, %s43
    %s46 = sphi 0, %s45
    %s60 = sphi 0, %s46
    %s64 = sphi 0, %s64
    %s66 = sphi 0, %s64
    %s67 = sphi 0, %s66
    %s81 = sphi 0, %s67
    %s87 = sphi 0, %s89
    %s90 = sphi 0, %s87
    %s91 = sphi 0, %s90
    %s107 = sphi 0, %s91
  $region4: #{tpu_custom_call.1} parent=0 // loop_header_branch
    %12 = sbr.rel (%p10) target = $region8
  $region5: #{tpu_custom_call.1} parent=0 // loop_body
    %s14 = ssub.s32 %s9, 1
    %s15 = ssub.s32 %s9, 2
    %s16 = sadd.s32 %s9, 1
    %s17 = ssub.s32 %s9, %s16
    %p18 = scmp.eq.s32.totalorder %s17, 0
    %s20 = sadd.s32 %s19, 1
    %s21 = scalar_select %p18, %s19, %s20
    %p24 = pneg %p18
    %p25 = scmp.eq.s32.totalorder %s9, 1
    %p26 = por %p24, %p25
    %p27 = scmp.ne.s32.totalorder %s19, %s22
    %p28 = scmp.eq.s32.totalorder %s9, 0
    %p29 = por %p27, %p28
    %p30 = scmp.ne.s32.totalorder %s19, %s22
    %p31 = scmp.eq.s32.totalorder %s14, 1
    %p32 = por %p30, %p31
    %p33 = scmp.ne.s32.totalorder %s22, %s23
    %p34 = scmp.eq.s32.totalorder %s14, 0
    %p35 = por %p33, %p34
    %p36 = scmp.ne.s32.totalorder %s22, %s23
    %p37 = scmp.eq.s32.totalorder %s15, 1
    %p38 = por %p36, %p37
    %p40 = scmp.ne.s32.totalorder %s23, %s39
    %p41 = scmp.eq.s32.totalorder %s15, 0
    %p42 = por %p40, %p41
    %s44 = sadd.s32 %s43, 1
    %p47 = scmp.eq.s32.totalorder %s9, 1
    %p48 = scmp.ne.s32.totalorder %s43, %s45
    %p49 = scmp.eq.s32.totalorder %s9, 0
    %p50 = por %p48, %p49
    %p51 = scmp.ne.s32.totalorder %s43, %s45
    %p52 = scmp.eq.s32.totalorder %s14, 1
    %p53 = por %p51, %p52
    %p54 = scmp.ne.s32.totalorder %s45, %s46
    %p55 = scmp.eq.s32.totalorder %s14, 0
    %p56 = por %p54, %p55
    %p57 = scmp.ne.s32.totalorder %s45, %s46
    %p58 = scmp.eq.s32.totalorder %s15, 1
    %p59 = por %p57, %p58
    %p61 = scmp.ne.s32.totalorder %s46, %s60
    %p62 = scmp.eq.s32.totalorder %s15, 0
    %p63 = por %p61, %p62
    %s65 = sadd.s32 %s64, 1
    %p68 = scmp.eq.s32.totalorder %s9, 1
    %p69 = scmp.ne.s32.totalorder %s64, %s66
    %p70 = scmp.eq.s32.totalorder %s9, 0
    %p71 = por %p69, %p70
    %p72 = scmp.ne.s32.totalorder %s64, %s66
    %p73 = scmp.eq.s32.totalorder %s14, 1
    %p74 = por %p72, %p73
    %p75 = scmp.ne.s32.totalorder %s66, %s67
    %p76 = scmp.eq.s32.totalorder %s14, 0
    %p77 = por %p75, %p76
    %p78 = scmp.ne.s32.totalorder %s66, %s67
    %p79 = scmp.eq.s32.totalorder %s15, 1
    %p80 = por %p78, %p79
    %p82 = scmp.ne.s32.totalorder %s67, %s81
    %p83 = scmp.eq.s32.totalorder %s15, 0
    %p84 = por %p82, %p83
    %s85 = ssub.s32 %s9, %s16
    %p86 = scmp.eq.s32.totalorder %s85, 0
    %s88 = sadd.s32 %s87, 1
    %s89 = scalar_select %p86, %s87, %s88
    %p92 = pneg %p86
    %p93 = scmp.eq.s32.totalorder %s9, 1
    %p94 = por %p92, %p93
    %p95 = scmp.ne.s32.totalorder %s87, %s90
    %p96 = scmp.eq.s32.totalorder %s9, 0
    %p97 = por %p95, %p96
    %p98 = scmp.ne.s32.totalorder %s87, %s90
    %p99 = scmp.eq.s32.totalorder %s14, 1
    %p100 = por %p98, %p99
    %p101 = scmp.ne.s32.totalorder %s90, %s91
    %p102 = scmp.eq.s32.totalorder %s14, 0
    %p103 = por %p101, %p102
    %p104 = scmp.ne.s32.totalorder %s90, %s91
    %p105 = scmp.eq.s32.totalorder %s15, 1
    %p106 = por %p104, %p105
    %p108 = scmp.ne.s32.totalorder %s91, %s107
    %p109 = scmp.eq.s32.totalorder %s15, 0
    %p110 = por %p108, %p109
    %p111 = scmp.le.s32.totalorder 1, %s9
    %p112 = scmp.lt.s32.totalorder %s9, 3
    %p113 = pnand %p111, %p112
    %p114 = pneg %p113
    // Predicated region
    $region9: #{tpu_custom_call.1} parent=5 // pred_check
      _
    $region10: #{tpu_custom_call.1} parent=5 // pred_check_branch
      %116 = sbr.rel (%p113) target = $region12
    $region11: #{tpu_custom_call.1} parent=5 // pred_region
      %s117 = ssub.s32 %s9, 1
      // Predicated region
      $region13: #{tpu_custom_call.1} parent=11 // pred_check
        %p118 = pneg %p56
      $region14: #{tpu_custom_call.1} parent=11 // pred_check_branch
        %120 = sbr.rel (%p118) target = $region16
      $region15: #{tpu_custom_call.1} parent=11 // pred_region
        _
      $region16: #{tpu_custom_call.1} parent=11 // pred_fallthru
        _
      // Predicated region
      $region17: #{tpu_custom_call.1} parent=11 // pred_check
        %p121 = pneg %p77
      $region18: #{tpu_custom_call.1} parent=11 // pred_check_branch
        %123 = sbr.rel (%p121) target = $region20
      $region19: #{tpu_custom_call.1} parent=11 // pred_region
        _
      $region20: #{tpu_custom_call.1} parent=11 // pred_fallthru
        _
    $region12: #{tpu_custom_call.1} parent=5 // pred_fallthru
      _
    %p124 = scmp.lt.s32.totalorder %s9, 2
    // Predicated region
    $region21: #{tpu_custom_call.1} parent=5 // pred_check
      %p125 = pneg %p124
    $region22: #{tpu_custom_call.1} parent=5 // pred_check_branch
      %127 = sbr.rel (%p125) target = $region24
    $region23: #{tpu_custom_call.1} parent=5 // pred_region
      // Predicated region
      $region25: #{tpu_custom_call.1} parent=23 // pred_check
        %p128 = pneg %p29
      $region26: #{tpu_custom_call.1} parent=23 // pred_check_branch
        %130 = sbr.rel (%p128) target = $region28
      $region27: #{tpu_custom_call.1} parent=23 // pred_region
        %s131 = smul.u32 8, %s9
        %p132 = scmp.lt.s32.totalorder %s131, 15
        %s133 = scalar_select %p132, %s131, 15
        %s134 = smul.addr %s133, 8
        %s135 = scalar_lea.vmem %s0, %s134
        %s136 = smul.u32 8, %s9
      $region28: #{tpu_custom_call.1} parent=23 // pred_fallthru
        _
    $region24: #{tpu_custom_call.1} parent=5 // pred_fallthru
      _
    %p137 = scmp.le.s32.totalorder 1, %s9
    %p138 = scmp.lt.s32.totalorder %s9, 3
    %p139 = pnand %p137, %p138
    %p140 = pneg %p139
    // Predicated region
    $region29: #{tpu_custom_call.1} parent=5 // pred_check
      _
    $region30: #{tpu_custom_call.1} parent=5 // pred_check_branch
      %142 = sbr.rel (%p139) target = $region32
    $region31: #{tpu_custom_call.1} parent=5 // pred_region
      %s143 = ssub.s32 %s9, 1
      %s144 = smul.u32 8, %s14
      %p145 = scmp.lt.s32.totalorder %s144, 15
      %s146 = scalar_select %p145, %s144, 15
      %s147 = smul.addr %s146, 8
      %s148 = scalar_lea.vmem %s0, %s147
      %p149 = pneg %p35
      %p150 = pneg %p32
      %p151 = pneg %p56
      %p152 = pneg %p53
      %p153 = pneg %p77
      %p154 = pneg %p74
      %p155 = pneg %p103
      %p156 = pneg %p100
      %s157 = smul.u32 8, %s14
      %p158 = scmp.lt.s32.totalorder %s157, 15
      %s159 = scalar_select %p158, %s157, 15
      %s160 = smul.addr %s159, 8
      %s161 = scalar_lea.vmem %s3, %s160
      %s162 = smul.u32 8, %s14
      %p163 = scmp.lt.s32.totalorder %s162, 15
      %s164 = scalar_select %p163, %s162, 15
      %s165 = smul.addr %s164, 8
      %s166 = scalar_lea.vmem %s0, %s165
      %s167 = smul.u32 8, %s14
      %s168 = smul.u32 8, %s14
      %p169 = scmp.lt.s32.totalorder %s168, 15
      %s170 = scalar_select %p169, %s168, 15
      %s171 = smul.addr %s170, 8
      %s172 = scalar_lea.vmem %s3, %s171
      %s173 = smul.u32 8, %s14
      %v174 = vld [vmem:[%s166] sm:$0xff]
      %v175 = vld [vmem:[%s166 + $0x8] sm:$0xff]
      %v176 = vld [vmem:[%s166 + $0x10] sm:$0xff]
      %v177 = vld [vmem:[%s166 + $0x18] sm:$0xff]
      %v178 = vld [vmem:[%s166 + $0x20] sm:$0xff]
      %v179 = vld [vmem:[%s166 + $0x28] sm:$0xff]
      %v180 = vld [vmem:[%s166 + $0x30] sm:$0xff]
      %v181 = vld [vmem:[%s166 + $0x38] sm:$0xff]
      %v182 = vld [vmem:[%s1] sm:$0xff]
      %v183 = vld [vmem:[%s1 + $0x8] sm:$0xff]
      %v184 = vld [vmem:[%s1 + $0x10] sm:$0xff]
      %v185 = vld [vmem:[%s1 + $0x18] sm:$0xff]
      %v186 = vld [vmem:[%s1 + $0x20] sm:$0xff]
      %v187 = vld [vmem:[%s1 + $0x28] sm:$0xff]
      %v188 = vld [vmem:[%s1 + $0x30] sm:$0xff]
      %v189 = vld [vmem:[%s1 + $0x38] sm:$0xff]
      %v190 = vld [vmem:[%s1 + $0x40] sm:$0xff]
      %v191 = vld [vmem:[%s1 + $0x48] sm:$0xff]
      %v192 = vld [vmem:[%s1 + $0x50] sm:$0xff]
      %v193 = vld [vmem:[%s1 + $0x58] sm:$0xff]
      %v194 = vld [vmem:[%s2] sm:$0x1]
      %v195 = vand.u32 2147483647, %v174
      %v196 = vand.u32 2147483647, %v175
      %v197 = vand.u32 2147483647, %v176
      %v198 = vand.u32 2147483647, %v177
      %v199 = vand.u32 2147483647, %v178
      %v200 = vand.u32 2147483647, %v179
      %v201 = vand.u32 2147483647, %v180
      %v202 = vand.u32 2147483647, %v181
      %v203 = vadd.f32 %v195, 1e-16
      %v204 = vadd.f32 %v196, 1e-16
      %v205 = vadd.f32 %v197, 1e-16
      %v206 = vadd.f32 %v198, 1e-16
      %v207 = vadd.f32 %v199, 1e-16
      %v208 = vadd.f32 %v200, 1e-16
      %v209 = vadd.f32 %v201, 1e-16
      %v210 = vadd.f32 %v202, 1e-16
      %v212 = vlaneseq
      %v213 = vshrl.u32 %v212, 7
      %v214 = vsub.s32 0, %v213
      %v215 = vrot.slane %v194, %v214
      %v217 = vmul.f32 %v215, %v203
      %v218 = vmul.f32 %v215, %v204
      %v219 = vmul.f32 %v215, %v205
      %v220 = vmul.f32 %v215, %v206
      %v221 = vmul.f32 %v215, %v207
      %v222 = vmul.f32 %v215, %v208
      %v223 = vmul.f32 %v215, %v209
      %v224 = vmul.f32 %v215, %v210
      %v225 = vsub.f32 1.0, %v194
      %v227 = vlaneseq
      %v228 = vshrl.u32 %v227, 7
      %v229 = vsub.s32 0, %v228
      %v230 = vrot.slane %v225, %v229
      %v232 = vadd.f32 %v217, %v230
      %v233 = vadd.f32 %v218, %v230
      %v234 = vadd.f32 %v219, %v230
      %v235 = vadd.f32 %v220, %v230
      %v236 = vadd.f32 %v221, %v230
      %v237 = vadd.f32 %v222, %v230
      %v238 = vadd.f32 %v223, %v230
      %v239 = vadd.f32 %v224, %v230
      %vm240 = vcmp.lt.f32.partialorder %v174, 0.0
      %vm241 = vcmp.lt.f32.partialorder %v175, 0.0
      %vm242 = vcmp.lt.f32.partialorder %v176, 0.0
      %vm243 = vcmp.lt.f32.partialorder %v177, 0.0
      %vm244 = vcmp.lt.f32.partialorder %v178, 0.0
      %vm245 = vcmp.lt.f32.partialorder %v179, 0.0
      %vm246 = vcmp.lt.f32.partialorder %v180, 0.0
      %vm247 = vcmp.lt.f32.partialorder %v181, 0.0
      %v248 = vsel %vm240, 1, 0
      %v249 = vsel %vm241, 1, 0
      %v250 = vsel %vm242, 1, 0
      %v251 = vsel %vm243, 1, 0
      %v252 = vsel %vm244, 1, 0
      %v253 = vsel %vm245, 1, 0
      %v254 = vsel %vm246, 1, 0
      %v255 = vsel %vm247, 1, 0
      %v256 = vcvt.s32.f32 %v248
      %v257 = vcvt.s32.f32 %v249
      %v258 = vcvt.s32.f32 %v250
      %v259 = vcvt.s32.f32 %v251
      %v260 = vcvt.s32.f32 %v252
      %v261 = vcvt.s32.f32 %v253
      %v262 = vcvt.s32.f32 %v254
      %v263 = vcvt.s32.f32 %v255
      %v264 = vmul.f32 %v215, %v256
      %v265 = vmul.f32 %v215, %v257
      %v266 = vmul.f32 %v215, %v258
      %v267 = vmul.f32 %v215, %v259
      %v268 = vmul.f32 %v215, %v260
      %v269 = vmul.f32 %v215, %v261
      %v270 = vmul.f32 %v215, %v262
      %v271 = vmul.f32 %v215, %v263
      %v272 = vlog2.pop %v232
      %v273 = vmul.f32 %v272, 0.6931472
      %v274 = vlog2.pop %v233
      %v275 = vmul.f32 %v274, 0.6931472
      %v276 = vlog2.pop %v234
      %v277 = vmul.f32 %v276, 0.6931472
      %v278 = vlog2.pop %v235
      %v279 = vmul.f32 %v278, 0.6931472
      %v280 = vlog2.pop %v236
      %v281 = vmul.f32 %v280, 0.6931472
      %v282 = vlog2.pop %v237
      %v283 = vmul.f32 %v282, 0.6931472
      %v284 = vlog2.pop %v238
      %v285 = vmul.f32 %v284, 0.6931472
      %v286 = vlog2.pop %v239
      %v287 = vmul.f32 %v286, 0.6931472
      %296 = vrot.lane.b32.xlu0 %v273, 32
      %v297 = vpop.permute.xlu0 %296
      %298 = vrot.lane.b32.xlu0 %v275, 32
      %v299 = vpop.permute.xlu0 %298
      %300 = vrot.lane.b32.xlu0 %v277, 32
      %v301 = vpop.permute.xlu0 %300
      %302 = vrot.lane.b32.xlu0 %v279, 32
      %v303 = vpop.permute.xlu0 %302
      %304 = vrot.lane.b32.xlu0 %v281, 32
      %v305 = vpop.permute.xlu0 %304
      %306 = vrot.lane.b32.xlu0 %v283, 32
      %v307 = vpop.permute.xlu0 %306
      %308 = vrot.lane.b32.xlu0 %v285, 32
      %v309 = vpop.permute.xlu0 %308
      %310 = vrot.lane.b32.xlu0 %v287, 32
      %v311 = vpop.permute.xlu0 %310
      %328 = vrot.lane.b32.xlu0 %v264, 64
      %v329 = vpop.permute.xlu0 %328
      %330 = vrot.lane.b32.xlu0 %v265, 64
      %v331 = vpop.permute.xlu0 %330
      %332 = vrot.lane.b32.xlu0 %v266, 64
      %v333 = vpop.permute.xlu0 %332
      %334 = vrot.lane.b32.xlu0 %v267, 64
      %v335 = vpop.permute.xlu0 %334
      %336 = vrot.lane.b32.xlu0 %v268, 64
      %v337 = vpop.permute.xlu0 %336
      %338 = vrot.lane.b32.xlu0 %v269, 64
      %v339 = vpop.permute.xlu0 %338
      %340 = vrot.lane.b32.xlu0 %v270, 64
      %v341 = vpop.permute.xlu0 %340
      %342 = vrot.lane.b32.xlu0 %v271, 64
      %v343 = vpop.permute.xlu0 %342
      %vm352 = vcmask 261120
      %v353 = vsel %vm352, %v174, %v297
      %v354 = vsel %vm352, %v175, %v299
      %v355 = vsel %vm352, %v176, %v301
      %v356 = vsel %vm352, %v177, %v303
      %v357 = vsel %vm352, %v178, %v305
      %v358 = vsel %vm352, %v179, %v307
      %v359 = vsel %vm352, %v180, %v309
      %v360 = vsel %vm352, %v181, %v311
      %vm361 = vcmask 523264
      %v362 = vsel %vm361, %v353, %v329
      %v363 = vsel %vm361, %v354, %v331
      %v364 = vsel %vm361, %v355, %v333
      %v365 = vsel %vm361, %v356, %v335
      %v366 = vsel %vm361, %v357, %v337
      %v367 = vsel %vm361, %v358, %v339
      %v368 = vsel %vm361, %v359, %v341
      %v369 = vsel %vm361, %v360, %v343
      %vm370 = vcmask 785408
      %v372 = vsel %vm370, %v362, 0
      %v375 = vsel %vm370, %v363, 0
      %v378 = vsel %vm370, %v364, 0
      %v381 = vsel %vm370, %v365, 0
      %v384 = vsel %vm370, %v366, 0
      %v387 = vsel %vm370, %v367, 0
      %v390 = vsel %vm370, %v368, 0
      %v393 = vsel %vm370, %v369, 0
      %395 = vmatprep.subr.mxu0 0.0
      %396 = vmatpush1.msra.mxu0 0.0
      %397 = vmatprep.subr.mxu0 0.0
      %398 = vmatpush1.msra.mxu0 0.0
      %399 = vmatprep.subr.mxu0 0.0
      %400 = vmatpush1.msra.mxu0 0.0
      %401 = vmatprep.subr.mxu0 0.0
      %402 = vmatpush1.msra.mxu0 0.0
      %403 = vmatprep.subr.mxu0 0.0
      %v404 = vand.u32 %v193, 4294901760
      %405 = vmatpush1.msra.mxu0 %v404
      %406 = vmatprep.subr.mxu0 0.0
      %v407 = vand.u32 %v192, 4294901760
      %408 = vmatpush1.msra.mxu0 %v407
      %409 = vmatprep.subr.mxu0 0.0
      %v410 = vand.u32 %v191, 4294901760
      %411 = vmatpush1.msra.mxu0 %v410
      %412 = vmatprep.subr.mxu0 0.0
      %v413 = vand.u32 %v190, 4294901760
      %414 = vmatpush1.msra.mxu0 %v413
      %415 = vmatprep.subr.mxu0 0.0
      %v416 = vand.u32 %v189, 4294901760
      %417 = vmatpush1.msra.mxu0 %v416
      %418 = vmatprep.subr.mxu0 0.0
      %v419 = vand.u32 %v188, 4294901760
      %420 = vmatpush1.msra.mxu0 %v419
      %421 = vmatprep.subr.mxu0 0.0
      %v422 = vand.u32 %v187, 4294901760
      %423 = vmatpush1.msra.mxu0 %v422
      %424 = vmatprep.subr.mxu0 0.0
      %v425 = vand.u32 %v186, 4294901760
      %426 = vmatpush1.msra.mxu0 %v425
      %427 = vmatprep.subr.mxu0 0.0
      %v428 = vand.u32 %v185, 4294901760
      %429 = vmatpush1.msra.mxu0 %v428
      %430 = vmatprep.subr.mxu0 0.0
      %v431 = vand.u32 %v184, 4294901760
      %432 = vmatpush1.msra.mxu0 %v431
      %433 = vmatprep.subr.mxu0 0.0
      %v434 = vand.u32 %v183, 4294901760
      %435 = vmatpush1.msra.mxu0 %v434
      %436 = vmatprep.subr.mxu0 0.0
      %v437 = vand.u32 %v182, 4294901760
      %438 = vmatpush1.msra.mxu0 %v437
      %439 = vmatprep.subr.mxu0 0.0
      %440 = vmatpush2.msra.mxu0 0.0
      %441 = vmatprep.subr.mxu0 0.0
      %442 = vmatpush2.msra.mxu0 0.0
      %443 = vmatprep.subr.mxu0 0.0
      %444 = vmatpush2.msra.mxu0 0.0
      %445 = vmatprep.subr.mxu0 0.0
      %446 = vmatpush2.msra.mxu0 0.0
      %447 = vmatprep.subr.mxu0 0.0
      %448 = vmatpush2.msra.mxu0 0.0
      %449 = vmatprep.subr.mxu0 0.0
      %450 = vmatpush2.msra.mxu0 0.0
      %451 = vmatprep.subr.mxu0 0.0
      %452 = vmatpush2.msra.mxu0 0.0
      %453 = vmatprep.subr.mxu0 0.0
      %454 = vmatpush2.msra.mxu0 0.0
      %455 = vmatprep.subr.mxu0 0.0
      %456 = vmatpush2.msra.mxu0 0.0
      %457 = vmatprep.subr.mxu0 0.0
      %458 = vmatpush2.msra.mxu0 0.0
      %459 = vmatprep.subr.mxu0 0.0
      %460 = vmatpush2.msra.mxu0 0.0
      %461 = vmatprep.subr.mxu0 0.0
      %462 = vmatpush2.msra.mxu0 0.0
      %463 = vmatprep.subr.mxu0 0.0
      %464 = vmatpush2.msra.mxu0 0.0
      %465 = vmatprep.subr.mxu0 0.0
      %466 = vmatpush2.msra.mxu0 0.0
      %467 = vmatprep.subr.mxu0 0.0
      %468 = vmatpush2.msra.mxu0 0.0
      %469 = vmatprep.subr.mxu0 0.0
      %470 = vmatpush2.msra.mxu0 0.0
      %471 = vmatprep.mubr.f32.mxu0 0.0
      %v472 = vand.u32 %v372, 4294901760
      %v473 = vsub.f32 %v372, %v472
      %v474 = vand.u32 %v473, 4294901760
      %v475 = vsub.f32 %v473, %v474
      %v476 = vand.u32 %v475, 4294901760
      %477 = vmatmul.mubr.f32.gmra.mxu0 %v476
      %v478 = vpop.f32.mrf.mxu0
      %v479 = vadd.f32 0.0, %v478
      %v480 = vpop.f32.mrf.mxu0
      %481 = vmatprep.mubr.f32.mxu0 0.0
      %v482 = vand.u32 %v375, 4294901760
      %v483 = vsub.f32 %v375, %v482
      %v484 = vand.u32 %v483, 4294901760
      %v485 = vsub.f32 %v483, %v484
      %v486 = vand.u32 %v485, 4294901760
      %487 = vmatmul.mubr.f32.gmra.mxu0 %v486
      %v488 = vpop.f32.mrf.mxu0
      %v489 = vadd.f32 0.0, %v488
      %v490 = vpop.f32.mrf.mxu0
      %491 = vmatprep.mubr.f32.mxu0 0.0
      %v492 = vand.u32 %v378, 4294901760
      %v493 = vsub.f32 %v378, %v492
      %v494 = vand.u32 %v493, 4294901760
      %v495 = vsub.f32 %v493, %v494
      %v496 = vand.u32 %v495, 4294901760
      %497 = vmatmul.mubr.f32.gmra.mxu0 %v496
      %v498 = vpop.f32.mrf.mxu0
      %v499 = vadd.f32 0.0, %v498
      %v500 = vpop.f32.mrf.mxu0
      %501 = vmatprep.mubr.f32.mxu0 0.0
      %v502 = vand.u32 %v381, 4294901760
      %v503 = vsub.f32 %v381, %v502
      %v504 = vand.u32 %v503, 4294901760
      %v505 = vsub.f32 %v503, %v504
      %v506 = vand.u32 %v505, 4294901760
      %507 = vmatmul.mubr.f32.gmra.mxu0 %v506
      %v508 = vpop.f32.mrf.mxu0
      %v509 = vadd.f32 0.0, %v508
      %v510 = vpop.f32.mrf.mxu0
      %511 = vmatprep.mubr.f32.mxu0 0.0
      %v512 = vand.u32 %v384, 4294901760
      %v513 = vsub.f32 %v384, %v512
      %v514 = vand.u32 %v513, 4294901760
      %v515 = vsub.f32 %v513, %v514
      %v516 = vand.u32 %v515, 4294901760
      %517 = vmatmul.mubr.f32.gmra.mxu0 %v516
      %v518 = vpop.f32.mrf.mxu0
      %v519 = vadd.f32 0.0, %v518
      %v520 = vpop.f32.mrf.mxu0
      %521 = vmatprep.mubr.f32.mxu0 0.0
      %v522 = vand.u32 %v387, 4294901760
      %v523 = vsub.f32 %v387, %v522
      %v524 = vand.u32 %v523, 4294901760
      %v525 = vsub.f32 %v523, %v524
      %v526 = vand.u32 %v525, 4294901760
      %527 = vmatmul.mubr.f32.gmra.mxu0 %v526
      %v528 = vpop.f32.mrf.mxu0
      %v529 = vadd.f32 0.0, %v528
      %v530 = vpop.f32.mrf.mxu0
      %531 = vmatprep.mubr.f32.mxu0 0.0
      %v532 = vand.u32 %v390, 4294901760
      %v533 = vsub.f32 %v390, %v532
      %v534 = vand.u32 %v533, 4294901760
      %v535 = vsub.f32 %v533, %v534
      %v536 = vand.u32 %v535, 4294901760
      %537 = vmatmul.mubr.f32.gmra.mxu0 %v536
      %v538 = vpop.f32.mrf.mxu0
      %v539 = vadd.f32 0.0, %v538
      %v540 = vpop.f32.mrf.mxu0
      %541 = vmatprep.mubr.f32.mxu0 0.0
      %v542 = vand.u32 %v393, 4294901760
      %v543 = vsub.f32 %v393, %v542
      %v544 = vand.u32 %v543, 4294901760
      %v545 = vsub.f32 %v543, %v544
      %v546 = vand.u32 %v545, 4294901760
      %547 = vmatmul.mubr.f32.gmra.mxu0 %v546
      %v548 = vpop.f32.mrf.mxu0
      %v549 = vadd.f32 0.0, %v548
      %v550 = vpop.f32.mrf.mxu0
      %551 = vdwg.mxu0
      %552 = vmatprep.subr.mxu0 0.0
      %553 = vmatpush1.msra.mxu0 0.0
      %554 = vmatprep.subr.mxu0 0.0
      %555 = vmatpush1.msra.mxu0 0.0
      %556 = vmatprep.subr.mxu0 0.0
      %557 = vmatpush1.msra.mxu0 0.0
      %558 = vmatprep.subr.mxu0 0.0
      %559 = vmatpush1.msra.mxu0 0.0
      %560 = vmatprep.subr.mxu0 0.0
      %v561 = vand.u32 %v193, 4294901760
      %v562 = vsub.f32 %v193, %v561
      %v563 = vand.u32 %v562, 4294901760
      %v564 = vsub.f32 %v562, %v563
      %v565 = vand.u32 %v564, 4294901760
      %566 = vmatpush1.msra.mxu0 %v565
      %567 = vmatprep.subr.mxu0 0.0
      %v568 = vand.u32 %v192, 4294901760
      %v569 = vsub.f32 %v192, %v568
      %v570 = vand.u32 %v569, 4294901760
      %v571 = vsub.f32 %v569, %v570
      %v572 = vand.u32 %v571, 4294901760
      %573 = vmatpush1.msra.mxu0 %v572
      %574 = vmatprep.subr.mxu0 0.0
      %v575 = vand.u32 %v191, 4294901760
      %v576 = vsub.f32 %v191, %v575
      %v577 = vand.u32 %v576, 4294901760
      %v578 = vsub.f32 %v576, %v577
      %v579 = vand.u32 %v578, 4294901760
      %580 = vmatpush1.msra.mxu0 %v579
      %581 = vmatprep.subr.mxu0 0.0
      %v582 = vand.u32 %v190, 4294901760
      %v583 = vsub.f32 %v190, %v582
      %v584 = vand.u32 %v583, 4294901760
      %v585 = vsub.f32 %v583, %v584
      %v586 = vand.u32 %v585, 4294901760
      %587 = vmatpush1.msra.mxu0 %v586
      %588 = vmatprep.subr.mxu0 0.0
      %v589 = vand.u32 %v189, 4294901760
      %v590 = vsub.f32 %v189, %v589
      %v591 = vand.u32 %v590, 4294901760
      %v592 = vsub.f32 %v590, %v591
      %v593 = vand.u32 %v592, 4294901760
      %594 = vmatpush1.msra.mxu0 %v593
      %595 = vmatprep.subr.mxu0 0.0
      %v596 = vand.u32 %v188, 4294901760
      %v597 = vsub.f32 %v188, %v596
      %v598 = vand.u32 %v597, 4294901760
      %v599 = vsub.f32 %v597, %v598
      %v600 = vand.u32 %v599, 4294901760
      %601 = vmatpush1.msra.mxu0 %v600
      %602 = vmatprep.subr.mxu0 0.0
      %v603 = vand.u32 %v187, 4294901760
      %v604 = vsub.f32 %v187, %v603
      %v605 = vand.u32 %v604, 4294901760
      %v606 = vsub.f32 %v604, %v605
      %v607 = vand.u32 %v606, 4294901760
      %608 = vmatpush1.msra.mxu0 %v607
      %609 = vmatprep.subr.mxu0 0.0
      %v610 = vand.u32 %v186, 4294901760
      %v611 = vsub.f32 %v186, %v610
      %v612 = vand.u32 %v611, 4294901760
      %v613 = vsub.f32 %v611, %v612
      %v614 = vand.u32 %v613, 4294901760
      %615 = vmatpush1.msra.mxu0 %v614
      %616 = vmatprep.subr.mxu0 0.0
      %v617 = vand.u32 %v185, 4294901760
      %v618 = vsub.f32 %v185, %v617
      %v619 = vand.u32 %v618, 4294901760
      %v620 = vsub.f32 %v618, %v619
      %v621 = vand.u32 %v620, 4294901760
      %622 = vmatpush1.msra.mxu0 %v621
      %623 = vmatprep.subr.mxu0 0.0
      %v624 = vand.u32 %v184, 4294901760
      %v625 = vsub.f32 %v184, %v624
      %v626 = vand.u32 %v625, 4294901760
      %v627 = vsub.f32 %v625, %v626
      %v628 = vand.u32 %v627, 4294901760
      %629 = vmatpush1.msra.mxu0 %v628
      %630 = vmatprep.subr.mxu0 0.0
      %v631 = vand.u32 %v183, 4294901760
      %v632 = vsub.f32 %v183, %v631
      %v633 = vand.u32 %v632, 4294901760
      %v634 = vsub.f32 %v632, %v633
      %v635 = vand.u32 %v634, 4294901760
      %636 = vmatpush1.msra.mxu0 %v635
      %637 = vmatprep.subr.mxu0 0.0
      %v638 = vand.u32 %v182, 4294901760
      %v639 = vsub.f32 %v182, %v638
      %v640 = vand.u32 %v639, 4294901760
      %v641 = vsub.f32 %v639, %v640
      %v642 = vand.u32 %v641, 4294901760
      %643 = vmatpush1.msra.mxu0 %v642
      %644 = vmatprep.subr.mxu0 0.0
      %645 = vmatpush2.msra.mxu0 0.0
      %646 = vmatprep.subr.mxu0 0.0
      %647 = vmatpush2.msra.mxu0 0.0
      %648 = vmatprep.subr.mxu0 0.0
      %649 = vmatpush2.msra.mxu0 0.0
      %650 = vmatprep.subr.mxu0 0.0
      %651 = vmatpush2.msra.mxu0 0.0
      %652 = vmatprep.subr.mxu0 0.0
      %653 = vmatpush2.msra.mxu0 0.0
      %654 = vmatprep.subr.mxu0 0.0
      %655 = vmatpush2.msra.mxu0 0.0
      %656 = vmatprep.subr.mxu0 0.0
      %657 = vmatpush2.msra.mxu0 0.0
      %658 = vmatprep.subr.mxu0 0.0
      %659 = vmatpush2.msra.mxu0 0.0
      %660 = vmatprep.subr.mxu0 0.0
      %661 = vmatpush2.msra.mxu0 0.0
      %662 = vmatprep.subr.mxu0 0.0
      %663 = vmatpush2.msra.mxu0 0.0
      %664 = vmatprep.subr.mxu0 0.0
      %665 = vmatpush2.msra.mxu0 0.0
      %666 = vmatprep.subr.mxu0 0.0
      %667 = vmatpush2.msra.mxu0 0.0
      %668 = vmatprep.subr.mxu0 0.0
      %669 = vmatpush2.msra.mxu0 0.0
      %670 = vmatprep.subr.mxu0 0.0
      %671 = vmatpush2.msra.mxu0 0.0
      %672 = vmatprep.subr.mxu0 0.0
      %673 = vmatpush2.msra.mxu0 0.0
      %674 = vmatprep.subr.mxu0 0.0
      %675 = vmatpush2.msra.mxu0 0.0
      %676 = vmatprep.mubr.f32.mxu0 0.0
      %v677 = vand.u32 %v372, 4294901760
      %678 = vmatmul.mubr.f32.gmra.mxu0 %v677
      %v679 = vpop.f32.mrf.mxu0
      %v680 = vadd.f32 %v479, %v679
      %v681 = vpop.f32.mrf.mxu0
      %682 = vmatprep.mubr.f32.mxu0 0.0
      %v683 = vand.u32 %v375, 4294901760
      %684 = vmatmul.mubr.f32.gmra.mxu0 %v683
      %v685 = vpop.f32.mrf.mxu0
      %v686 = vadd.f32 %v489, %v685
      %v687 = vpop.f32.mrf.mxu0
      %688 = vmatprep.mubr.f32.mxu0 0.0
      %v689 = vand.u32 %v378, 4294901760
      %690 = vmatmul.mubr.f32.gmra.mxu0 %v689
      %v691 = vpop.f32.mrf.mxu0
      %v692 = vadd.f32 %v499, %v691
      %v693 = vpop.f32.mrf.mxu0
      %694 = vmatprep.mubr.f32.mxu0 0.0
      %v695 = vand.u32 %v381, 4294901760
      %696 = vmatmul.mubr.f32.gmra.mxu0 %v695
      %v697 = vpop.f32.mrf.mxu0
      %v698 = vadd.f32 %v509, %v697
      %v699 = vpop.f32.mrf.mxu0
      %700 = vmatprep.mubr.f32.mxu0 0.0
      %v701 = vand.u32 %v384, 4294901760
      %702 = vmatmul.mubr.f32.gmra.mxu0 %v701
      %v703 = vpop.f32.mrf.mxu0
      %v704 = vadd.f32 %v519, %v703
      %v705 = vpop.f32.mrf.mxu0
      %706 = vmatprep.mubr.f32.mxu0 0.0
      %v707 = vand.u32 %v387, 4294901760
      %708 = vmatmul.mubr.f32.gmra.mxu0 %v707
      %v709 = vpop.f32.mrf.mxu0
      %v710 = vadd.f32 %v529, %v709
      %v711 = vpop.f32.mrf.mxu0
      %712 = vmatprep.mubr.f32.mxu0 0.0
      %v713 = vand.u32 %v390, 4294901760
      %714 = vmatmul.mubr.f32.gmra.mxu0 %v713
      %v715 = vpop.f32.mrf.mxu0
      %v716 = vadd.f32 %v539, %v715
      %v717 = vpop.f32.mrf.mxu0
      %718 = vmatprep.mubr.f32.mxu0 0.0
      %v719 = vand.u32 %v393, 4294901760
      %720 = vmatmul.mubr.f32.gmra.mxu0 %v719
      %v721 = vpop.f32.mrf.mxu0
      %v722 = vadd.f32 %v549, %v721
      %v723 = vpop.f32.mrf.mxu0
      %724 = vdwg.mxu0
      %725 = vmatprep.subr.mxu0 0.0
      %726 = vmatpush1.msra.mxu0 0.0
      %727 = vmatprep.subr.mxu0 0.0
      %728 = vmatpush1.msra.mxu0 0.0
      %729 = vmatprep.subr.mxu0 0.0
      %730 = vmatpush1.msra.mxu0 0.0
      %731 = vmatprep.subr.mxu0 0.0
      %732 = vmatpush1.msra.mxu0 0.0
      %733 = vmatprep.subr.mxu0 0.0
      %v734 = vand.u32 %v193, 4294901760
      %v735 = vsub.f32 %v193, %v734
      %736 = vmatpush1.msra.mxu0 %v735
      %737 = vmatprep.subr.mxu0 0.0
      %v738 = vand.u32 %v192, 4294901760
      %v739 = vsub.f32 %v192, %v738
      %740 = vmatpush1.msra.mxu0 %v739
      %741 = vmatprep.subr.mxu0 0.0
      %v742 = vand.u32 %v191, 4294901760
      %v743 = vsub.f32 %v191, %v742
      %744 = vmatpush1.msra.mxu0 %v743
      %745 = vmatprep.subr.mxu0 0.0
      %v746 = vand.u32 %v190, 4294901760
      %v747 = vsub.f32 %v190, %v746
      %748 = vmatpush1.msra.mxu0 %v747
      %749 = vmatprep.subr.mxu0 0.0
      %v750 = vand.u32 %v189, 4294901760
      %v751 = vsub.f32 %v189, %v750
      %752 = vmatpush1.msra.mxu0 %v751
      %753 = vmatprep.subr.mxu0 0.0
      %v754 = vand.u32 %v188, 4294901760
      %v755 = vsub.f32 %v188, %v754
      %756 = vmatpush1.msra.mxu0 %v755
      %757 = vmatprep.subr.mxu0 0.0
      %v758 = vand.u32 %v187, 4294901760
      %v759 = vsub.f32 %v187, %v758
      %760 = vmatpush1.msra.mxu0 %v759
      %761 = vmatprep.subr.mxu0 0.0
      %v762 = vand.u32 %v186, 4294901760
      %v763 = vsub.f32 %v186, %v762
      %764 = vmatpush1.msra.mxu0 %v763
      %765 = vmatprep.subr.mxu0 0.0
      %v766 = vand.u32 %v185, 4294901760
      %v767 = vsub.f32 %v185, %v766
      %768 = vmatpush1.msra.mxu0 %v767
      %769 = vmatprep.subr.mxu0 0.0
      %v770 = vand.u32 %v184, 4294901760
      %v771 = vsub.f32 %v184, %v770
      %772 = vmatpush1.msra.mxu0 %v771
      %773 = vmatprep.subr.mxu0 0.0
      %v774 = vand.u32 %v183, 4294901760
      %v775 = vsub.f32 %v183, %v774
      %776 = vmatpush1.msra.mxu0 %v775
      %777 = vmatprep.subr.mxu0 0.0
      %v778 = vand.u32 %v182, 4294901760
      %v779 = vsub.f32 %v182, %v778
      %780 = vmatpush1.msra.mxu0 %v779
      %781 = vmatprep.subr.mxu0 0.0
      %782 = vmatpush2.msra.mxu0 0.0
      %783 = vmatprep.subr.mxu0 0.0
      %784 = vmatpush2.msra.mxu0 0.0
      %785 = vmatprep.subr.mxu0 0.0
      %786 = vmatpush2.msra.mxu0 0.0
      %787 = vmatprep.subr.mxu0 0.0
      %788 = vmatpush2.msra.mxu0 0.0
      %789 = vmatprep.subr.mxu0 0.0
      %790 = vmatpush2.msra.mxu0 0.0
      %791 = vmatprep.subr.mxu0 0.0
      %792 = vmatpush2.msra.mxu0 0.0
      %793 = vmatprep.subr.mxu0 0.0
      %794 = vmatpush2.msra.mxu0 0.0
      %795 = vmatprep.subr.mxu0 0.0
      %796 = vmatpush2.msra.mxu0 0.0
      %797 = vmatprep.subr.mxu0 0.0
      %798 = vmatpush2.msra.mxu0 0.0
      %799 = vmatprep.subr.mxu0 0.0
      %800 = vmatpush2.msra.mxu0 0.0
      %801 = vmatprep.subr.mxu0 0.0
      %802 = vmatpush2.msra.mxu0 0.0
      %803 = vmatprep.subr.mxu0 0.0
      %804 = vmatpush2.msra.mxu0 0.0
      %805 = vmatprep.subr.mxu0 0.0
      %806 = vmatpush2.msra.mxu0 0.0
      %807 = vmatprep.subr.mxu0 0.0
      %808 = vmatpush2.msra.mxu0 0.0
      %809 = vmatprep.subr.mxu0 0.0
      %810 = vmatpush2.msra.mxu0 0.0
      %811 = vmatprep.subr.mxu0 0.0
      %812 = vmatpush2.msra.mxu0 0.0
      %813 = vmatprep.mubr.f32.mxu0 0.0
      %v814 = vand.u32 %v372, 4294901760
      %v815 = vsub.f32 %v372, %v814
      %816 = vmatmul.mubr.f32.gmra.mxu0 %v815
      %v817 = vpop.f32.mrf.mxu0
      %v818 = vadd.f32 %v680, %v817
      %v819 = vpop.f32.mrf.mxu0
      %820 = vmatprep.mubr.f32.mxu0 0.0
      %v821 = vand.u32 %v375, 4294901760
      %v822 = vsub.f32 %v375, %v821
      %823 = vmatmul.mubr.f32.gmra.mxu0 %v822
      %v824 = vpop.f32.mrf.mxu0
      %v825 = vadd.f32 %v686, %v824
      %v826 = vpop.f32.mrf.mxu0
      %827 = vmatprep.mubr.f32.mxu0 0.0
      %v828 = vand.u32 %v378, 4294901760
      %v829 = vsub.f32 %v378, %v828
      %830 = vmatmul.mubr.f32.gmra.mxu0 %v829
      %v831 = vpop.f32.mrf.mxu0
      %v832 = vadd.f32 %v692, %v831
      %v833 = vpop.f32.mrf.mxu0
      %834 = vmatprep.mubr.f32.mxu0 0.0
      %v835 = vand.u32 %v381, 4294901760
      %v836 = vsub.f32 %v381, %v835
      %837 = vmatmul.mubr.f32.gmra.mxu0 %v836
      %v838 = vpop.f32.mrf.mxu0
      %v839 = vadd.f32 %v698, %v838
      %v840 = vpop.f32.mrf.mxu0
      %841 = vmatprep.mubr.f32.mxu0 0.0
      %v842 = vand.u32 %v384, 4294901760
      %v843 = vsub.f32 %v384, %v842
      %844 = vmatmul.mubr.f32.gmra.mxu0 %v843
      %v845 = vpop.f32.mrf.mxu0
      %v846 = vadd.f32 %v704, %v845
      %v847 = vpop.f32.mrf.mxu0
      %848 = vmatprep.mubr.f32.mxu0 0.0
      %v849 = vand.u32 %v387, 4294901760
      %v850 = vsub.f32 %v387, %v849
      %851 = vmatmul.mubr.f32.gmra.mxu0 %v850
      %v852 = vpop.f32.mrf.mxu0
      %v853 = vadd.f32 %v710, %v852
      %v854 = vpop.f32.mrf.mxu0
      %855 = vmatprep.mubr.f32.mxu0 0.0
      %v856 = vand.u32 %v390, 4294901760
      %v857 = vsub.f32 %v390, %v856
      %858 = vmatmul.mubr.f32.gmra.mxu0 %v857
      %v859 = vpop.f32.mrf.mxu0
      %v860 = vadd.f32 %v716, %v859
      %v861 = vpop.f32.mrf.mxu0
      %862 = vmatprep.mubr.f32.mxu0 0.0
      %v863 = vand.u32 %v393, 4294901760
      %v864 = vsub.f32 %v393, %v863
      %865 = vmatmul.mubr.f32.gmra.mxu0 %v864
      %v866 = vpop.f32.mrf.mxu0
      %v867 = vadd.f32 %v722, %v866
      %v868 = vpop.f32.mrf.mxu0
      %869 = vdwg.mxu0
      %870 = vmatprep.subr.mxu0 0.0
      %871 = vmatpush1.msra.mxu0 0.0
      %872 = vmatprep.subr.mxu0 0.0
      %873 = vmatpush1.msra.mxu0 0.0
      %874 = vmatprep.subr.mxu0 0.0
      %875 = vmatpush1.msra.mxu0 0.0
      %876 = vmatprep.subr.mxu0 0.0
      %877 = vmatpush1.msra.mxu0 0.0
      %878 = vmatprep.subr.mxu0 0.0
      %v879 = vand.u32 %v193, 4294901760
      %880 = vmatpush1.msra.mxu0 %v879
      %881 = vmatprep.subr.mxu0 0.0
      %v882 = vand.u32 %v192, 4294901760
      %883 = vmatpush1.msra.mxu0 %v882
      %884 = vmatprep.subr.mxu0 0.0
      %v885 = vand.u32 %v191, 4294901760
      %886 = vmatpush1.msra.mxu0 %v885
      %887 = vmatprep.subr.mxu0 0.0
      %v888 = vand.u32 %v190, 4294901760
      %889 = vmatpush1.msra.mxu0 %v888
      %890 = vmatprep.subr.mxu0 0.0
      %v891 = vand.u32 %v189, 4294901760
      %892 = vmatpush1.msra.mxu0 %v891
      %893 = vmatprep.subr.mxu0 0.0
      %v894 = vand.u32 %v188, 4294901760
      %895 = vmatpush1.msra.mxu0 %v894
      %896 = vmatprep.subr.mxu0 0.0
      %v897 = vand.u32 %v187, 4294901760
      %898 = vmatpush1.msra.mxu0 %v897
      %899 = vmatprep.subr.mxu0 0.0
      %v900 = vand.u32 %v186, 4294901760
      %901 = vmatpush1.msra.mxu0 %v900
      %902 = vmatprep.subr.mxu0 0.0
      %v903 = vand.u32 %v185, 4294901760
      %904 = vmatpush1.msra.mxu0 %v903
      %905 = vmatprep.subr.mxu0 0.0
      %v906 = vand.u32 %v184, 4294901760
      %907 = vmatpush1.msra.mxu0 %v906
      %908 = vmatprep.subr.mxu0 0.0
      %v909 = vand.u32 %v183, 4294901760
      %910 = vmatpush1.msra.mxu0 %v909
      %911 = vmatprep.subr.mxu0 0.0
      %v912 = vand.u32 %v182, 4294901760
      %913 = vmatpush1.msra.mxu0 %v912
      %914 = vmatprep.subr.mxu0 0.0
      %915 = vmatpush2.msra.mxu0 0.0
      %916 = vmatprep.subr.mxu0 0.0
      %917 = vmatpush2.msra.mxu0 0.0
      %918 = vmatprep.subr.mxu0 0.0
      %919 = vmatpush2.msra.mxu0 0.0
      %920 = vmatprep.subr.mxu0 0.0
      %921 = vmatpush2.msra.mxu0 0.0
      %922 = vmatprep.subr.mxu0 0.0
      %923 = vmatpush2.msra.mxu0 0.0
      %924 = vmatprep.subr.mxu0 0.0
      %925 = vmatpush2.msra.mxu0 0.0
      %926 = vmatprep.subr.mxu0 0.0
      %927 = vmatpush2.msra.mxu0 0.0
      %928 = vmatprep.subr.mxu0 0.0
      %929 = vmatpush2.msra.mxu0 0.0
      %930 = vmatprep.subr.mxu0 0.0
      %931 = vmatpush2.msra.mxu0 0.0
      %932 = vmatprep.subr.mxu0 0.0
      %933 = vmatpush2.msra.mxu0 0.0
      %934 = vmatprep.subr.mxu0 0.0
      %935 = vmatpush2.msra.mxu0 0.0
      %936 = vmatprep.subr.mxu0 0.0
      %937 = vmatpush2.msra.mxu0 0.0
      %938 = vmatprep.subr.mxu0 0.0
      %939 = vmatpush2.msra.mxu0 0.0
      %940 = vmatprep.subr.mxu0 0.0
      %941 = vmatpush2.msra.mxu0 0.0
      %942 = vmatprep.subr.mxu0 0.0
      %943 = vmatpush2.msra.mxu0 0.0
      %944 = vmatprep.subr.mxu0 0.0
      %945 = vmatpush2.msra.mxu0 0.0
      %946 = vmatprep.mubr.f32.mxu0 0.0
      %v947 = vand.u32 %v372, 4294901760
      %v948 = vsub.f32 %v372, %v947
      %v949 = vand.u32 %v948, 4294901760
      %950 = vmatmul.mubr.f32.gmra.mxu0 %v949
      %v951 = vpop.f32.mrf.mxu0
      %v952 = vadd.f32 %v818, %v951
      %v953 = vpop.f32.mrf.mxu0
      %954 = vmatprep.mubr.f32.mxu0 0.0
      %v955 = vand.u32 %v375, 4294901760
      %v956 = vsub.f32 %v375, %v955
      %v957 = vand.u32 %v956, 4294901760
      %958 = vmatmul.mubr.f32.gmra.mxu0 %v957
      %v959 = vpop.f32.mrf.mxu0
      %v960 = vadd.f32 %v825, %v959
      %v961 = vpop.f32.mrf.mxu0
      %962 = vmatprep.mubr.f32.mxu0 0.0
      %v963 = vand.u32 %v378, 4294901760
      %v964 = vsub.f32 %v378, %v963
      %v965 = vand.u32 %v964, 4294901760
      %966 = vmatmul.mubr.f32.gmra.mxu0 %v965
      %v967 = vpop.f32.mrf.mxu0
      %v968 = vadd.f32 %v832, %v967
      %v969 = vpop.f32.mrf.mxu0
      %970 = vmatprep.mubr.f32.mxu0 0.0
      %v971 = vand.u32 %v381, 4294901760
      %v972 = vsub.f32 %v381, %v971
      %v973 = vand.u32 %v972, 4294901760
      %974 = vmatmul.mubr.f32.gmra.mxu0 %v973
      %v975 = vpop.f32.mrf.mxu0
      %v976 = vadd.f32 %v839, %v975
      %v977 = vpop.f32.mrf.mxu0
      %978 = vmatprep.mubr.f32.mxu0 0.0
      %v979 = vand.u32 %v384, 4294901760
      %v980 = vsub.f32 %v384, %v979
      %v981 = vand.u32 %v980, 4294901760
      %982 = vmatmul.mubr.f32.gmra.mxu0 %v981
      %v983 = vpop.f32.mrf.mxu0
      %v984 = vadd.f32 %v846, %v983
      %v985 = vpop.f32.mrf.mxu0
      %986 = vmatprep.mubr.f32.mxu0 0.0
      %v987 = vand.u32 %v387, 4294901760
      %v988 = vsub.f32 %v387, %v987
      %v989 = vand.u32 %v988, 4294901760
      %990 = vmatmul.mubr.f32.gmra.mxu0 %v989
      %v991 = vpop.f32.mrf.mxu0
      %v992 = vadd.f32 %v853, %v991
      %v993 = vpop.f32.mrf.mxu0
      %994 = vmatprep.mubr.f32.mxu0 0.0
      %v995 = vand.u32 %v390, 4294901760
      %v996 = vsub.f32 %v390, %v995
      %v997 = vand.u32 %v996, 4294901760
      %998 = vmatmul.mubr.f32.gmra.mxu0 %v997
      %v999 = vpop.f32.mrf.mxu0
      %v1000 = vadd.f32 %v860, %v999
      %v1001 = vpop.f32.mrf.mxu0
      %1002 = vmatprep.mubr.f32.mxu0 0.0
      %v1003 = vand.u32 %v393, 4294901760
      %v1004 = vsub.f32 %v393, %v1003
      %v1005 = vand.u32 %v1004, 4294901760
      %1006 = vmatmul.mubr.f32.gmra.mxu0 %v1005
      %v1007 = vpop.f32.mrf.mxu0
      %v1008 = vadd.f32 %v867, %v1007
      %v1009 = vpop.f32.mrf.mxu0
      %1010 = vdwg.mxu0
      %1011 = vmatprep.subr.mxu0 0.0
      %1012 = vmatpush1.msra.mxu0 0.0
      %1013 = vmatprep.subr.mxu0 0.0
      %1014 = vmatpush1.msra.mxu0 0.0
      %1015 = vmatprep.subr.mxu0 0.0
      %1016 = vmatpush1.msra.mxu0 0.0
      %1017 = vmatprep.subr.mxu0 0.0
      %1018 = vmatpush1.msra.mxu0 0.0
      %1019 = vmatprep.subr.mxu0 0.0
      %v1020 = vand.u32 %v193, 4294901760
      %v1021 = vsub.f32 %v193, %v1020
      %v1022 = vand.u32 %v1021, 4294901760
      %1023 = vmatpush1.msra.mxu0 %v1022
      %1024 = vmatprep.subr.mxu0 0.0
      %v1025 = vand.u32 %v192, 4294901760
      %v1026 = vsub.f32 %v192, %v1025
      %v1027 = vand.u32 %v1026, 4294901760
      %1028 = vmatpush1.msra.mxu0 %v1027
      %1029 = vmatprep.subr.mxu0 0.0
      %v1030 = vand.u32 %v191, 4294901760
      %v1031 = vsub.f32 %v191, %v1030
      %v1032 = vand.u32 %v1031, 4294901760
      %1033 = vmatpush1.msra.mxu0 %v1032
      %1034 = vmatprep.subr.mxu0 0.0
      %v1035 = vand.u32 %v190, 4294901760
      %v1036 = vsub.f32 %v190, %v1035
      %v1037 = vand.u32 %v1036, 4294901760
      %1038 = vmatpush1.msra.mxu0 %v1037
      %1039 = vmatprep.subr.mxu0 0.0
      %v1040 = vand.u32 %v189, 4294901760
      %v1041 = vsub.f32 %v189, %v1040
      %v1042 = vand.u32 %v1041, 4294901760
      %1043 = vmatpush1.msra.mxu0 %v1042
      %1044 = vmatprep.subr.mxu0 0.0
      %v1045 = vand.u32 %v188, 4294901760
      %v1046 = vsub.f32 %v188, %v1045
      %v1047 = vand.u32 %v1046, 4294901760
      %1048 = vmatpush1.msra.mxu0 %v1047
      %1049 = vmatprep.subr.mxu0 0.0
      %v1050 = vand.u32 %v187, 4294901760
      %v1051 = vsub.f32 %v187, %v1050
      %v1052 = vand.u32 %v1051, 4294901760
      %1053 = vmatpush1.msra.mxu0 %v1052
      %1054 = vmatprep.subr.mxu0 0.0
      %v1055 = vand.u32 %v186, 4294901760
      %v1056 = vsub.f32 %v186, %v1055
      %v1057 = vand.u32 %v1056, 4294901760
      %1058 = vmatpush1.msra.mxu0 %v1057
      %1059 = vmatprep.subr.mxu0 0.0
      %v1060 = vand.u32 %v185, 4294901760
      %v1061 = vsub.f32 %v185, %v1060
      %v1062 = vand.u32 %v1061, 4294901760
      %1063 = vmatpush1.msra.mxu0 %v1062
      %1064 = vmatprep.subr.mxu0 0.0
      %v1065 = vand.u32 %v184, 4294901760
      %v1066 = vsub.f32 %v184, %v1065
      %v1067 = vand.u32 %v1066, 4294901760
      %1068 = vmatpush1.msra.mxu0 %v1067
      %1069 = vmatprep.subr.mxu0 0.0
      %v1070 = vand.u32 %v183, 4294901760
      %v1071 = vsub.f32 %v183, %v1070
      %v1072 = vand.u32 %v1071, 4294901760
      %1073 = vmatpush1.msra.mxu0 %v1072
      %1074 = vmatprep.subr.mxu0 0.0
      %v1075 = vand.u32 %v182, 4294901760
      %v1076 = vsub.f32 %v182, %v1075
      %v1077 = vand.u32 %v1076, 4294901760
      %1078 = vmatpush1.msra.mxu0 %v1077
      %1079 = vmatprep.subr.mxu0 0.0
      %1080 = vmatpush2.msra.mxu0 0.0
      %1081 = vmatprep.subr.mxu0 0.0
      %1082 = vmatpush2.msra.mxu0 0.0
      %1083 = vmatprep.subr.mxu0 0.0
      %1084 = vmatpush2.msra.mxu0 0.0
      %1085 = vmatprep.subr.mxu0 0.0
      %1086 = vmatpush2.msra.mxu0 0.0
      %1087 = vmatprep.subr.mxu0 0.0
      %1088 = vmatpush2.msra.mxu0 0.0
      %1089 = vmatprep.subr.mxu0 0.0
      %1090 = vmatpush2.msra.mxu0 0.0
      %1091 = vmatprep.subr.mxu0 0.0
      %1092 = vmatpush2.msra.mxu0 0.0
      %1093 = vmatprep.subr.mxu0 0.0
      %1094 = vmatpush2.msra.mxu0 0.0
      %1095 = vmatprep.subr.mxu0 0.0
      %1096 = vmatpush2.msra.mxu0 0.0
      %1097 = vmatprep.subr.mxu0 0.0
      %1098 = vmatpush2.msra.mxu0 0.0
      %1099 = vmatprep.subr.mxu0 0.0
      %1100 = vmatpush2.msra.mxu0 0.0
      %1101 = vmatprep.subr.mxu0 0.0
      %1102 = vmatpush2.msra.mxu0 0.0
      %1103 = vmatprep.subr.mxu0 0.0
      %1104 = vmatpush2.msra.mxu0 0.0
      %1105 = vmatprep.subr.mxu0 0.0
      %1106 = vmatpush2.msra.mxu0 0.0
      %1107 = vmatprep.subr.mxu0 0.0
      %1108 = vmatpush2.msra.mxu0 0.0
      %1109 = vmatprep.subr.mxu0 0.0
      %1110 = vmatpush2.msra.mxu0 0.0
      %1111 = vmatprep.mubr.f32.mxu0 0.0
      %v1112 = vand.u32 %v372, 4294901760
      %1113 = vmatmul.mubr.f32.gmra.mxu0 %v1112
      %v1114 = vpop.f32.mrf.mxu0
      %v1115 = vadd.f32 %v952, %v1114
      %v1116 = vpop.f32.mrf.mxu0
      %1117 = vmatprep.mubr.f32.mxu0 0.0
      %v1118 = vand.u32 %v375, 4294901760
      %1119 = vmatmul.mubr.f32.gmra.mxu0 %v1118
      %v1120 = vpop.f32.mrf.mxu0
      %v1121 = vadd.f32 %v960, %v1120
      %v1122 = vpop.f32.mrf.mxu0
      %1123 = vmatprep.mubr.f32.mxu0 0.0
      %v1124 = vand.u32 %v378, 4294901760
      %1125 = vmatmul.mubr.f32.gmra.mxu0 %v1124
      %v1126 = vpop.f32.mrf.mxu0
      %v1127 = vadd.f32 %v968, %v1126
      %v1128 = vpop.f32.mrf.mxu0
      %1129 = vmatprep.mubr.f32.mxu0 0.0
      %v1130 = vand.u32 %v381, 4294901760
      %1131 = vmatmul.mubr.f32.gmra.mxu0 %v1130
      %v1132 = vpop.f32.mrf.mxu0
      %v1133 = vadd.f32 %v976, %v1132
      %v1134 = vpop.f32.mrf.mxu0
      %1135 = vmatprep.mubr.f32.mxu0 0.0
      %v1136 = vand.u32 %v384, 4294901760
      %1137 = vmatmul.mubr.f32.gmra.mxu0 %v1136
      %v1138 = vpop.f32.mrf.mxu0
      %v1139 = vadd.f32 %v984, %v1138
      %v1140 = vpop.f32.mrf.mxu0
      %1141 = vmatprep.mubr.f32.mxu0 0.0
      %v1142 = vand.u32 %v387, 4294901760
      %1143 = vmatmul.mubr.f32.gmra.mxu0 %v1142
      %v1144 = vpop.f32.mrf.mxu0
      %v1145 = vadd.f32 %v992, %v1144
      %v1146 = vpop.f32.mrf.mxu0
      %1147 = vmatprep.mubr.f32.mxu0 0.0
      %v1148 = vand.u32 %v390, 4294901760
      %1149 = vmatmul.mubr.f32.gmra.mxu0 %v1148
      %v1150 = vpop.f32.mrf.mxu0
      %v1151 = vadd.f32 %v1000, %v1150
      %v1152 = vpop.f32.mrf.mxu0
      %1153 = vmatprep.mubr.f32.mxu0 0.0
      %v1154 = vand.u32 %v393, 4294901760
      %1155 = vmatmul.mubr.f32.gmra.mxu0 %v1154
      %v1156 = vpop.f32.mrf.mxu0
      %v1157 = vadd.f32 %v1008, %v1156
      %v1158 = vpop.f32.mrf.mxu0
      %1159 = vdwg.mxu0
      %1160 = vmatprep.subr.mxu0 0.0
      %1161 = vmatpush1.msra.mxu0 0.0
      %1162 = vmatprep.subr.mxu0 0.0
      %1163 = vmatpush1.msra.mxu0 0.0
      %1164 = vmatprep.subr.mxu0 0.0
      %1165 = vmatpush1.msra.mxu0 0.0
      %1166 = vmatprep.subr.mxu0 0.0
      %1167 = vmatpush1.msra.mxu0 0.0
      %1168 = vmatprep.subr.mxu0 0.0
      %v1169 = vand.u32 %v193, 4294901760
      %1170 = vmatpush1.msra.mxu0 %v1169
      %1171 = vmatprep.subr.mxu0 0.0
      %v1172 = vand.u32 %v192, 4294901760
      %1173 = vmatpush1.msra.mxu0 %v1172
      %1174 = vmatprep.subr.mxu0 0.0
      %v1175 = vand.u32 %v191, 4294901760
      %1176 = vmatpush1.msra.mxu0 %v1175
      %1177 = vmatprep.subr.mxu0 0.0
      %v1178 = vand.u32 %v190, 4294901760
      %1179 = vmatpush1.msra.mxu0 %v1178
      %1180 = vmatprep.subr.mxu0 0.0
      %v1181 = vand.u32 %v189, 4294901760
      %1182 = vmatpush1.msra.mxu0 %v1181
      %1183 = vmatprep.subr.mxu0 0.0
      %v1184 = vand.u32 %v188, 4294901760
      %1185 = vmatpush1.msra.mxu0 %v1184
      %1186 = vmatprep.subr.mxu0 0.0
      %v1187 = vand.u32 %v187, 4294901760
      %1188 = vmatpush1.msra.mxu0 %v1187
      %1189 = vmatprep.subr.mxu0 0.0
      %v1190 = vand.u32 %v186, 4294901760
      %1191 = vmatpush1.msra.mxu0 %v1190
      %1192 = vmatprep.subr.mxu0 0.0
      %v1193 = vand.u32 %v185, 4294901760
      %1194 = vmatpush1.msra.mxu0 %v1193
      %1195 = vmatprep.subr.mxu0 0.0
      %v1196 = vand.u32 %v184, 4294901760
      %1197 = vmatpush1.msra.mxu0 %v1196
      %1198 = vmatprep.subr.mxu0 0.0
      %v1199 = vand.u32 %v183, 4294901760
      %1200 = vmatpush1.msra.mxu0 %v1199
      %1201 = vmatprep.subr.mxu0 0.0
      %v1202 = vand.u32 %v182, 4294901760
      %1203 = vmatpush1.msra.mxu0 %v1202
      %1204 = vmatprep.subr.mxu0 0.0
      %1205 = vmatpush2.msra.mxu0 0.0
      %1206 = vmatprep.subr.mxu0 0.0
      %1207 = vmatpush2.msra.mxu0 0.0
      %1208 = vmatprep.subr.mxu0 0.0
      %1209 = vmatpush2.msra.mxu0 0.0
      %1210 = vmatprep.subr.mxu0 0.0
      %1211 = vmatpush2.msra.mxu0 0.0
      %1212 = vmatprep.subr.mxu0 0.0
      %1213 = vmatpush2.msra.mxu0 0.0
      %1214 = vmatprep.subr.mxu0 0.0
      %1215 = vmatpush2.msra.mxu0 0.0
      %1216 = vmatprep.subr.mxu0 0.0
      %1217 = vmatpush2.msra.mxu0 0.0
      %1218 = vmatprep.subr.mxu0 0.0
      %1219 = vmatpush2.msra.mxu0 0.0
      %1220 = vmatprep.subr.mxu0 0.0
      %1221 = vmatpush2.msra.mxu0 0.0
      %1222 = vmatprep.subr.mxu0 0.0
      %1223 = vmatpush2.msra.mxu0 0.0
      %1224 = vmatprep.subr.mxu0 0.0
      %1225 = vmatpush2.msra.mxu0 0.0
      %1226 = vmatprep.subr.mxu0 0.0
      %1227 = vmatpush2.msra.mxu0 0.0
      %1228 = vmatprep.subr.mxu0 0.0
      %1229 = vmatpush2.msra.mxu0 0.0
      %1230 = vmatprep.subr.mxu0 0.0
      %1231 = vmatpush2.msra.mxu0 0.0
      %1232 = vmatprep.subr.mxu0 0.0
      %1233 = vmatpush2.msra.mxu0 0.0
      %1234 = vmatprep.subr.mxu0 0.0
      %1235 = vmatpush2.msra.mxu0 0.0
      %1236 = vmatprep.mubr.f32.mxu0 0.0
      %v1237 = vand.u32 %v372, 4294901760
      %1238 = vmatmul.mubr.f32.gmra.mxu0 %v1237
      %v1239 = vpop.f32.mrf.mxu0
      %v1240 = vadd.f32 %v1115, %v1239
      %v1241 = vpop.f32.mrf.mxu0
      %1242 = vmatprep.mubr.f32.mxu0 0.0
      %v1243 = vand.u32 %v375, 4294901760
      %1244 = vmatmul.mubr.f32.gmra.mxu0 %v1243
      %v1245 = vpop.f32.mrf.mxu0
      %v1246 = vadd.f32 %v1121, %v1245
      %v1247 = vpop.f32.mrf.mxu0
      %1248 = vmatprep.mubr.f32.mxu0 0.0
      %v1249 = vand.u32 %v378, 4294901760
      %1250 = vmatmul.mubr.f32.gmra.mxu0 %v1249
      %v1251 = vpop.f32.mrf.mxu0
      %v1252 = vadd.f32 %v1127, %v1251
      %v1253 = vpop.f32.mrf.mxu0
      %1254 = vmatprep.mubr.f32.mxu0 0.0
      %v1255 = vand.u32 %v381, 4294901760
      %1256 = vmatmul.mubr.f32.gmra.mxu0 %v1255
      %v1257 = vpop.f32.mrf.mxu0
      %v1258 = vadd.f32 %v1133, %v1257
      %v1259 = vpop.f32.mrf.mxu0
      %1260 = vmatprep.mubr.f32.mxu0 0.0
      %v1261 = vand.u32 %v384, 4294901760
      %1262 = vmatmul.mubr.f32.gmra.mxu0 %v1261
      %v1263 = vpop.f32.mrf.mxu0
      %v1264 = vadd.f32 %v1139, %v1263
      %v1265 = vpop.f32.mrf.mxu0
      %1266 = vmatprep.mubr.f32.mxu0 0.0
      %v1267 = vand.u32 %v387, 4294901760
      %1268 = vmatmul.mubr.f32.gmra.mxu0 %v1267
      %v1269 = vpop.f32.mrf.mxu0
      %v1270 = vadd.f32 %v1145, %v1269
      %v1271 = vpop.f32.mrf.mxu0
      %1272 = vmatprep.mubr.f32.mxu0 0.0
      %v1273 = vand.u32 %v390, 4294901760
      %1274 = vmatmul.mubr.f32.gmra.mxu0 %v1273
      %v1275 = vpop.f32.mrf.mxu0
      %v1276 = vadd.f32 %v1151, %v1275
      %v1277 = vpop.f32.mrf.mxu0
      %1278 = vmatprep.mubr.f32.mxu0 0.0
      %v1279 = vand.u32 %v393, 4294901760
      %1280 = vmatmul.mubr.f32.gmra.mxu0 %v1279
      %v1281 = vpop.f32.mrf.mxu0
      %v1282 = vadd.f32 %v1157, %v1281
      %v1283 = vpop.f32.mrf.mxu0
      %1284 = vdwg.mxu0
      %v1285 = vxor.u32 %v1240, 2147483648
      %v1286 = vxor.u32 %v1246, 2147483648
      %v1287 = vxor.u32 %v1252, 2147483648
      %v1288 = vxor.u32 %v1258, 2147483648
      %v1289 = vxor.u32 %v1264, 2147483648
      %v1290 = vxor.u32 %v1270, 2147483648
      %v1291 = vxor.u32 %v1276, 2147483648
      %v1292 = vxor.u32 %v1282, 2147483648
      %v1293 = vmul.f32 %v1285, 1.442695
      %v1294 = vpow.pop %v1293
      %v1295 = vmul.f32 %v1286, 1.442695
      %v1296 = vpow.pop %v1295
      %v1297 = vmul.f32 %v1287, 1.442695
      %v1298 = vpow.pop %v1297
      %v1299 = vmul.f32 %v1288, 1.442695
      %v1300 = vpow.pop %v1299
      %v1301 = vmul.f32 %v1289, 1.442695
      %v1302 = vpow.pop %v1301
      %v1303 = vmul.f32 %v1290, 1.442695
      %v1304 = vpow.pop %v1303
      %v1305 = vmul.f32 %v1291, 1.442695
      %v1306 = vpow.pop %v1305
      %v1307 = vmul.f32 %v1292, 1.442695
      %v1308 = vpow.pop %v1307
      %v1309 = vadd.f32 %v1294, 1.0
      %v1310 = vadd.f32 %v1296, 1.0
      %v1311 = vadd.f32 %v1298, 1.0
      %v1312 = vadd.f32 %v1300, 1.0
      %v1313 = vadd.f32 %v1302, 1.0
      %v1314 = vadd.f32 %v1304, 1.0
      %v1315 = vadd.f32 %v1306, 1.0
      %v1316 = vadd.f32 %v1308, 1.0
      %v1317 = vrcp.pop %v1309
      %v1318 = vmul.f32 1.0, %v1317
      %v1319 = vrcp.pop %v1310
      %v1320 = vmul.f32 1.0, %v1319
      %v1321 = vrcp.pop %v1311
      %v1322 = vmul.f32 1.0, %v1321
      %v1323 = vrcp.pop %v1312
      %v1324 = vmul.f32 1.0, %v1323
      %v1325 = vrcp.pop %v1313
      %v1326 = vmul.f32 1.0, %v1325
      %v1327 = vrcp.pop %v1314
      %v1328 = vmul.f32 1.0, %v1327
      %v1329 = vrcp.pop %v1315
      %v1330 = vmul.f32 1.0, %v1329
      %v1331 = vrcp.pop %v1316
      %v1332 = vmul.f32 1.0, %v1331
      %v1333 = vmul.f32 %v1240, 1.442695
      %v1334 = vpow.pop %v1333
      %v1335 = vmul.f32 %v1246, 1.442695
      %v1336 = vpow.pop %v1335
      %v1337 = vmul.f32 %v1252, 1.442695
      %v1338 = vpow.pop %v1337
      %v1339 = vmul.f32 %v1258, 1.442695
      %v1340 = vpow.pop %v1339
      %v1341 = vmul.f32 %v1264, 1.442695
      %v1342 = vpow.pop %v1341
      %v1343 = vmul.f32 %v1270, 1.442695
      %v1344 = vpow.pop %v1343
      %v1345 = vmul.f32 %v1276, 1.442695
      %v1346 = vpow.pop %v1345
      %v1347 = vmul.f32 %v1282, 1.442695
      %v1348 = vpow.pop %v1347
      %v1349 = vand.u32 2147483647, %v1240
      %vm1350 = vcmp.le.f32.partialorder %v1349, 0.7853982
      %vm1351 = vcmp.lt.s32.totalorder %v1240, 0
      %v1352 = vand.u32 %v1240, 2139095040
      %v1353 = vshrl.u32 %v1352, 23
      %v1354 = vsub.s32 %v1353, 127
      %v1355 = vand.u32 2147483647, %v1240
      %v1356 = vand.u32 %v1355, 8388607
      %v1357 = vor.u32 %v1356, 8388608
      %v1358 = vsub.s32 0, %v1357
      %v1359 = vadd.s32 %v1354, 1
      %vm1360 = vcmp.gt.s32.totalorder %v1359, 0
      %v1361 = vsel %vm1360, %v1359, 0
      %v1362 = vshrl.u32 %v1361, 5
      %v1363 = vand.u32 %v1361, 31
      %v1364 = vsub.s32 32, %v1363
      %v1365 = vshrl.u32 683565275, %v1364
      %v1366 = vshll.u32 683565275, %v1363
      %v1367 = vshrl.u32 2475754826, %v1364
      %v1368 = vor.u32 %v1366, %v1367
      %v1369 = vshll.u32 2475754826, %v1363
      %v1370 = vshrl.u32 2131351028, %v1364
      %v1371 = vor.u32 %v1369, %v1370
      %v1372 = vshll.u32 2131351028, %v1363
      %v1373 = vshrl.u32 2102212464, %v1364
      %v1374 = vor.u32 %v1372, %v1373
      %v1375 = vshll.u32 2102212464, %v1363
      %v1376 = vshrl.u32 920167782, %v1364
      %v1377 = vor.u32 %v1375, %v1376
      %v1378 = vshll.u32 920167782, %v1363
      %v1379 = vshrl.u32 1326507024, %v1364
      %v1380 = vor.u32 %v1378, %v1379
      %vm1381 = vcmp.lt.s32.totalorder %v1362, 1
      %vm1382 = vcmp.lt.s32.totalorder %v1362, 2
      %vm1383 = vcmp.lt.s32.totalorder %v1362, 3
      %vm1384 = vcmp.lt.s32.totalorder %v1362, 4
      %v1385 = vsel %vm1381, %v1365, %v1368
      %v1386 = vsel %vm1384, %v1374, 2102212464
      %v1387 = vsel %vm1383, %v1371, %v1386
      %v1388 = vsel %vm1382, %v1385, %v1387
      %v1389 = vsel %vm1381, %v1368, %v1371
      %v1390 = vsel %vm1384, %v1377, 920167782
      %v1391 = vsel %vm1383, %v1374, %v1390
      %v1392 = vsel %vm1382, %v1389, %v1391
      %v1393 = vsel %vm1381, %v1371, %v1374
      %v1394 = vsel %vm1384, %v1380, 1326507024
      %v1395 = vsel %vm1383, %v1377, %v1394
      %v1396 = vsel %vm1382, %v1393, %v1395
      %v1397 = vshll.u32 %v1357, 8
      %v1398 = vmul.u32.u64.compose %v1397, %v1396
      %v1399 = vextract.low.u32 %v1398
      %v1400 = vextract.high.u32 %v1398
      %v1401 = vmul.u32.u64.compose %v1397, %v1392
      %v1402 = vextract.low.u32 %v1401
      %v1403 = vextract.high.u32 %v1401
      %v1404 = vmul.u32 %v1397, %v1388
      %v1405 = vadd.s32 %v1400, %v1402
      %vm1406 = vc.u32 %v1400, %v1402
      %v1407 = vadd.s32 %v1403, 1
      %v1408 = vsel %vm1406, %v1407, %v1403
      %v1409 = vadd.s32 %v1404, %v1408
      %v1410 = vadd.s32 %v1409, 536870912
      %v1411 = vshrl.u32 %v1410, 30
      %v1412 = vshll.u32 %v1411, 30
      %v1413 = vsub.s32 %v1409, %v1412
      %vm1414 = vcmp.lt.s32.totalorder %v1413, 0
      %v1415 = vsub.s32 0, %v1413
      %v1416 = vsel %vm1414, %v1415, %v1413
      %v1417 = vclz %v1416
      %v1418 = vsub.s32 %v1417, 2
      %vm1419 = vcmp.gt.s32.totalorder 0, %v1418
      %v1420 = vsel %vm1419, 0, %v1418
      %v1421 = vsub.s32 32, %v1420
      %v1422 = vshll.u32 %v1413, %v1420
      %v1423 = vshrl.u32 %v1405, %v1421
      %v1424 = vor.u32 %v1422, %v1423
      %v1425 = vsub.s32 4294967266, %v1420
      %v1426 = vadd.s32 %v1425, 127
      %v1427 = vshll.u32 %v1426, 23
      %v1428 = vor.u32 4788187, %v1427
      %v1429 = vand.u32 2147483647, %v1428
      %v1431 = vcvt.s32.f32 %v1424
      %v1432 = vmul.f32 %v1431, %v1429
      %v1433 = vxor.u32 %v1432, 2147483648
      %v1434 = vsel %vm1351, %v1433, %v1432
      %v1435 = vsub.s32 4, %v1411
      %v1436 = vsel %vm1351, %v1435, %v1411
      %v1437 = vsel %vm1350, %v1240, %v1434
      %v1438 = vsel %vm1350, 0, %v1436
      %v1439 = vcosq.f32.pop %v1437
      %v1440 = vsinq.f32.pop %v1437
      %vm1441 = vweird.f32 %v1240
      %v1442 = vand.u32 %v1438, 3
      %vm1443 = vcmp.lt.s32.totalorder %v1442, 2
      %vm1444 = vcmp.eq.s32.totalorder %v1442, 0
      %v1445 = vxor.u32 %v1440, 2147483648
      %v1446 = vsel %vm1444, %v1439, %v1445
      %vm1447 = vcmp.eq.s32.totalorder %v1442, 2
      %v1448 = vxor.u32 %v1439, 2147483648
      %v1449 = vsel %vm1447, %v1448, %v1440
      %v1450 = vsel %vm1443, %v1446, %v1449
      %v1451 = vsel %vm1441, nan, %v1450
      %v1452 = vand.u32 2147483647, %v1246
      %vm1453 = vcmp.le.f32.partialorder %v1452, 0.7853982
      %vm1454 = vcmp.lt.s32.totalorder %v1246, 0
      %v1455 = vand.u32 %v1246, 2139095040
      %v1456 = vshrl.u32 %v1455, 23
      %v1457 = vsub.s32 %v1456, 127
      %v1458 = vand.u32 2147483647, %v1246
      %v1459 = vand.u32 %v1458, 8388607
      %v1460 = vor.u32 %v1459, 8388608
      %v1461 = vsub.s32 0, %v1460
      %v1462 = vadd.s32 %v1457, 1
      %vm1463 = vcmp.gt.s32.totalorder %v1462, 0
      %v1464 = vsel %vm1463, %v1462, 0
      %v1465 = vshrl.u32 %v1464, 5
      %v1466 = vand.u32 %v1464, 31
      %v1467 = vsub.s32 32, %v1466
      %v1468 = vshrl.u32 683565275, %v1467
      %v1469 = vshll.u32 683565275, %v1466
      %v1470 = vshrl.u32 2475754826, %v1467
      %v1471 = vor.u32 %v1469, %v1470
      %v1472 = vshll.u32 2475754826, %v1466
      %v1473 = vshrl.u32 2131351028, %v1467
      %v1474 = vor.u32 %v1472, %v1473
      %v1475 = vshll.u32 2131351028, %v1466
      %v1476 = vshrl.u32 2102212464, %v1467
      %v1477 = vor.u32 %v1475, %v1476
      %v1478 = vshll.u32 2102212464, %v1466
      %v1479 = vshrl.u32 920167782, %v1467
      %v1480 = vor.u32 %v1478, %v1479
      %v1481 = vshll.u32 920167782, %v1466
      %v1482 = vshrl.u32 1326507024, %v1467
      %v1483 = vor.u32 %v1481, %v1482
      %vm1484 = vcmp.lt.s32.totalorder %v1465, 1
      %vm1485 = vcmp.lt.s32.totalorder %v1465, 2
      %vm1486 = vcmp.lt.s32.totalorder %v1465, 3
      %vm1487 = vcmp.lt.s32.totalorder %v1465, 4
      %v1488 = vsel %vm1484, %v1468, %v1471
      %v1489 = vsel %vm1487, %v1477, 2102212464
      %v1490 = vsel %vm1486, %v1474, %v1489
      %v1491 = vsel %vm1485, %v1488, %v1490
      %v1492 = vsel %vm1484, %v1471, %v1474
      %v1493 = vsel %vm1487, %v1480, 920167782
      %v1494 = vsel %vm1486, %v1477, %v1493
      %v1495 = vsel %vm1485, %v1492, %v1494
      %v1496 = vsel %vm1484, %v1474, %v1477
      %v1497 = vsel %vm1487, %v1483, 1326507024
      %v1498 = vsel %vm1486, %v1480, %v1497
      %v1499 = vsel %vm1485, %v1496, %v1498
      %v1500 = vshll.u32 %v1460, 8
      %v1501 = vmul.u32.u64.compose %v1500, %v1499
      %v1502 = vextract.low.u32 %v1501
      %v1503 = vextract.high.u32 %v1501
      %v1504 = vmul.u32.u64.compose %v1500, %v1495
      %v1505 = vextract.low.u32 %v1504
      %v1506 = vextract.high.u32 %v1504
      %v1507 = vmul.u32 %v1500, %v1491
      %v1508 = vadd.s32 %v1503, %v1505
      %vm1509 = vc.u32 %v1503, %v1505
      %v1510 = vadd.s32 %v1506, 1
      %v1511 = vsel %vm1509, %v1510, %v1506
      %v1512 = vadd.s32 %v1507, %v1511
      %v1513 = vadd.s32 %v1512, 536870912
      %v1514 = vshrl.u32 %v1513, 30
      %v1515 = vshll.u32 %v1514, 30
      %v1516 = vsub.s32 %v1512, %v1515
      %vm1517 = vcmp.lt.s32.totalorder %v1516, 0
      %v1518 = vsub.s32 0, %v1516
      %v1519 = vsel %vm1517, %v1518, %v1516
      %v1520 = vclz %v1519
      %v1521 = vsub.s32 %v1520, 2
      %vm1522 = vcmp.gt.s32.totalorder 0, %v1521
      %v1523 = vsel %vm1522, 0, %v1521
      %v1524 = vsub.s32 32, %v1523
      %v1525 = vshll.u32 %v1516, %v1523
      %v1526 = vshrl.u32 %v1508, %v1524
      %v1527 = vor.u32 %v1525, %v1526
      %v1528 = vsub.s32 4294967266, %v1523
      %v1529 = vadd.s32 %v1528, 127
      %v1530 = vshll.u32 %v1529, 23
      %v1531 = vor.u32 4788187, %v1530
      %v1532 = vand.u32 2147483647, %v1531
      %v1534 = vcvt.s32.f32 %v1527
      %v1535 = vmul.f32 %v1534, %v1532
      %v1536 = vxor.u32 %v1535, 2147483648
      %v1537 = vsel %vm1454, %v1536, %v1535
      %v1538 = vsub.s32 4, %v1514
      %v1539 = vsel %vm1454, %v1538, %v1514
      %v1540 = vsel %vm1453, %v1246, %v1537
      %v1541 = vsel %vm1453, 0, %v1539
      %v1542 = vcosq.f32.pop %v1540
      %v1543 = vsinq.f32.pop %v1540
      %vm1544 = vweird.f32 %v1246
      %v1545 = vand.u32 %v1541, 3
      %vm1546 = vcmp.lt.s32.totalorder %v1545, 2
      %vm1547 = vcmp.eq.s32.totalorder %v1545, 0
      %v1548 = vxor.u32 %v1543, 2147483648
      %v1549 = vsel %vm1547, %v1542, %v1548
      %vm1550 = vcmp.eq.s32.totalorder %v1545, 2
      %v1551 = vxor.u32 %v1542, 2147483648
      %v1552 = vsel %vm1550, %v1551, %v1543
      %v1553 = vsel %vm1546, %v1549, %v1552
      %v1554 = vsel %vm1544, nan, %v1553
      %v1555 = vand.u32 2147483647, %v1252
      %vm1556 = vcmp.le.f32.partialorder %v1555, 0.7853982
      %vm1557 = vcmp.lt.s32.totalorder %v1252, 0
      %v1558 = vand.u32 %v1252, 2139095040
      %v1559 = vshrl.u32 %v1558, 23
      %v1560 = vsub.s32 %v1559, 127
      %v1561 = vand.u32 2147483647, %v1252
      %v1562 = vand.u32 %v1561, 8388607
      %v1563 = vor.u32 %v1562, 8388608
      %v1564 = vsub.s32 0, %v1563
      %v1565 = vadd.s32 %v1560, 1
      %vm1566 = vcmp.gt.s32.totalorder %v1565, 0
      %v1567 = vsel %vm1566, %v1565, 0
      %v1568 = vshrl.u32 %v1567, 5
      %v1569 = vand.u32 %v1567, 31
      %v1570 = vsub.s32 32, %v1569
      %v1571 = vshrl.u32 683565275, %v1570
      %v1572 = vshll.u32 683565275, %v1569
      %v1573 = vshrl.u32 2475754826, %v1570
      %v1574 = vor.u32 %v1572, %v1573
      %v1575 = vshll.u32 2475754826, %v1569
      %v1576 = vshrl.u32 2131351028, %v1570
      %v1577 = vor.u32 %v1575, %v1576
      %v1578 = vshll.u32 2131351028, %v1569
      %v1579 = vshrl.u32 2102212464, %v1570
      %v1580 = vor.u32 %v1578, %v1579
      %v1581 = vshll.u32 2102212464, %v1569
      %v1582 = vshrl.u32 920167782, %v1570
      %v1583 = vor.u32 %v1581, %v1582
      %v1584 = vshll.u32 920167782, %v1569
      %v1585 = vshrl.u32 1326507024, %v1570
      %v1586 = vor.u32 %v1584, %v1585
      %vm1587 = vcmp.lt.s32.totalorder %v1568, 1
      %vm1588 = vcmp.lt.s32.totalorder %v1568, 2
      %vm1589 = vcmp.lt.s32.totalorder %v1568, 3
      %vm1590 = vcmp.lt.s32.totalorder %v1568, 4
      %v1591 = vsel %vm1587, %v1571, %v1574
      %v1592 = vsel %vm1590, %v1580, 2102212464
      %v1593 = vsel %vm1589, %v1577, %v1592
      %v1594 = vsel %vm1588, %v1591, %v1593
      %v1595 = vsel %vm1587, %v1574, %v1577
      %v1596 = vsel %vm1590, %v1583, 920167782
      %v1597 = vsel %vm1589, %v1580, %v1596
      %v1598 = vsel %vm1588, %v1595, %v1597
      %v1599 = vsel %vm1587, %v1577, %v1580
      %v1600 = vsel %vm1590, %v1586, 1326507024
      %v1601 = vsel %vm1589, %v1583, %v1600
      %v1602 = vsel %vm1588, %v1599, %v1601
      %v1603 = vshll.u32 %v1563, 8
      %v1604 = vmul.u32.u64.compose %v1603, %v1602
      %v1605 = vextract.low.u32 %v1604
      %v1606 = vextract.high.u32 %v1604
      %v1607 = vmul.u32.u64.compose %v1603, %v1598
      %v1608 = vextract.low.u32 %v1607
      %v1609 = vextract.high.u32 %v1607
      %v1610 = vmul.u32 %v1603, %v1594
      %v1611 = vadd.s32 %v1606, %v1608
      %vm1612 = vc.u32 %v1606, %v1608
      %v1613 = vadd.s32 %v1609, 1
      %v1614 = vsel %vm1612, %v1613, %v1609
      %v1615 = vadd.s32 %v1610, %v1614
      %v1616 = vadd.s32 %v1615, 536870912
      %v1617 = vshrl.u32 %v1616, 30
      %v1618 = vshll.u32 %v1617, 30
      %v1619 = vsub.s32 %v1615, %v1618
      %vm1620 = vcmp.lt.s32.totalorder %v1619, 0
      %v1621 = vsub.s32 0, %v1619
      %v1622 = vsel %vm1620, %v1621, %v1619
      %v1623 = vclz %v1622
      %v1624 = vsub.s32 %v1623, 2
      %vm1625 = vcmp.gt.s32.totalorder 0, %v1624
      %v1626 = vsel %vm1625, 0, %v1624
      %v1627 = vsub.s32 32, %v1626
      %v1628 = vshll.u32 %v1619, %v1626
      %v1629 = vshrl.u32 %v1611, %v1627
      %v1630 = vor.u32 %v1628, %v1629
      %v1631 = vsub.s32 4294967266, %v1626
      %v1632 = vadd.s32 %v1631, 127
      %v1633 = vshll.u32 %v1632, 23
      %v1634 = vor.u32 4788187, %v1633
      %v1635 = vand.u32 2147483647, %v1634
      %v1637 = vcvt.s32.f32 %v1630
      %v1638 = vmul.f32 %v1637, %v1635
      %v1639 = vxor.u32 %v1638, 2147483648
      %v1640 = vsel %vm1557, %v1639, %v1638
      %v1641 = vsub.s32 4, %v1617
      %v1642 = vsel %vm1557, %v1641, %v1617
      %v1643 = vsel %vm1556, %v1252, %v1640
      %v1644 = vsel %vm1556, 0, %v1642
      %v1645 = vcosq.f32.pop %v1643
      %v1646 = vsinq.f32.pop %v1643
      %vm1647 = vweird.f32 %v1252
      %v1648 = vand.u32 %v1644, 3
      %vm1649 = vcmp.lt.s32.totalorder %v1648, 2
      %vm1650 = vcmp.eq.s32.totalorder %v1648, 0
      %v1651 = vxor.u32 %v1646, 2147483648
      %v1652 = vsel %vm1650, %v1645, %v1651
      %vm1653 = vcmp.eq.s32.totalorder %v1648, 2
      %v1654 = vxor.u32 %v1645, 2147483648
      %v1655 = vsel %vm1653, %v1654, %v1646
      %v1656 = vsel %vm1649, %v1652, %v1655
      %v1657 = vsel %vm1647, nan, %v1656
      %v1658 = vand.u32 2147483647, %v1258
      %vm1659 = vcmp.le.f32.partialorder %v1658, 0.7853982
      %vm1660 = vcmp.lt.s32.totalorder %v1258, 0
      %v1661 = vand.u32 %v1258, 2139095040
      %v1662 = vshrl.u32 %v1661, 23
      %v1663 = vsub.s32 %v1662, 127
      %v1664 = vand.u32 2147483647, %v1258
      %v1665 = vand.u32 %v1664, 8388607
      %v1666 = vor.u32 %v1665, 8388608
      %v1667 = vsub.s32 0, %v1666
      %v1668 = vadd.s32 %v1663, 1
      %vm1669 = vcmp.gt.s32.totalorder %v1668, 0
      %v1670 = vsel %vm1669, %v1668, 0
      %v1671 = vshrl.u32 %v1670, 5
      %v1672 = vand.u32 %v1670, 31
      %v1673 = vsub.s32 32, %v1672
      %v1674 = vshrl.u32 683565275, %v1673
      %v1675 = vshll.u32 683565275, %v1672
      %v1676 = vshrl.u32 2475754826, %v1673
      %v1677 = vor.u32 %v1675, %v1676
      %v1678 = vshll.u32 2475754826, %v1672
      %v1679 = vshrl.u32 2131351028, %v1673
      %v1680 = vor.u32 %v1678, %v1679
      %v1681 = vshll.u32 2131351028, %v1672
      %v1682 = vshrl.u32 2102212464, %v1673
      %v1683 = vor.u32 %v1681, %v1682
      %v1684 = vshll.u32 2102212464, %v1672
      %v1685 = vshrl.u32 920167782, %v1673
      %v1686 = vor.u32 %v1684, %v1685
      %v1687 = vshll.u32 920167782, %v1672
      %v1688 = vshrl.u32 1326507024, %v1673
      %v1689 = vor.u32 %v1687, %v1688
      %vm1690 = vcmp.lt.s32.totalorder %v1671, 1
      %vm1691 = vcmp.lt.s32.totalorder %v1671, 2
      %vm1692 = vcmp.lt.s32.totalorder %v1671, 3
      %vm1693 = vcmp.lt.s32.totalorder %v1671, 4
      %v1694 = vsel %vm1690, %v1674, %v1677
      %v1695 = vsel %vm1693, %v1683, 2102212464
      %v1696 = vsel %vm1692, %v1680, %v1695
      %v1697 = vsel %vm1691, %v1694, %v1696
      %v1698 = vsel %vm1690, %v1677, %v1680
      %v1699 = vsel %vm1693, %v1686, 920167782
      %v1700 = vsel %vm1692, %v1683, %v1699
      %v1701 = vsel %vm1691, %v1698, %v1700
      %v1702 = vsel %vm1690, %v1680, %v1683
      %v1703 = vsel %vm1693, %v1689, 1326507024
      %v1704 = vsel %vm1692, %v1686, %v1703
      %v1705 = vsel %vm1691, %v1702, %v1704
      %v1706 = vshll.u32 %v1666, 8
      %v1707 = vmul.u32.u64.compose %v1706, %v1705
      %v1708 = vextract.low.u32 %v1707
      %v1709 = vextract.high.u32 %v1707
      %v1710 = vmul.u32.u64.compose %v1706, %v1701
      %v1711 = vextract.low.u32 %v1710
      %v1712 = vextract.high.u32 %v1710
      %v1713 = vmul.u32 %v1706, %v1697
      %v1714 = vadd.s32 %v1709, %v1711
      %vm1715 = vc.u32 %v1709, %v1711
      %v1716 = vadd.s32 %v1712, 1
      %v1717 = vsel %vm1715, %v1716, %v1712
      %v1718 = vadd.s32 %v1713, %v1717
      %v1719 = vadd.s32 %v1718, 536870912
      %v1720 = vshrl.u32 %v1719, 30
      %v1721 = vshll.u32 %v1720, 30
      %v1722 = vsub.s32 %v1718, %v1721
      %vm1723 = vcmp.lt.s32.totalorder %v1722, 0
      %v1724 = vsub.s32 0, %v1722
      %v1725 = vsel %vm1723, %v1724, %v1722
      %v1726 = vclz %v1725
      %v1727 = vsub.s32 %v1726, 2
      %vm1728 = vcmp.gt.s32.totalorder 0, %v1727
      %v1729 = vsel %vm1728, 0, %v1727
      %v1730 = vsub.s32 32, %v1729
      %v1731 = vshll.u32 %v1722, %v1729
      %v1732 = vshrl.u32 %v1714, %v1730
      %v1733 = vor.u32 %v1731, %v1732
      %v1734 = vsub.s32 4294967266, %v1729
      %v1735 = vadd.s32 %v1734, 127
      %v1736 = vshll.u32 %v1735, 23
      %v1737 = vor.u32 4788187, %v1736
      %v1738 = vand.u32 2147483647, %v1737
      %v1740 = vcvt.s32.f32 %v1733
      %v1741 = vmul.f32 %v1740, %v1738
      %v1742 = vxor.u32 %v1741, 2147483648
      %v1743 = vsel %vm1660, %v1742, %v1741
      %v1744 = vsub.s32 4, %v1720
      %v1745 = vsel %vm1660, %v1744, %v1720
      %v1746 = vsel %vm1659, %v1258, %v1743
      %v1747 = vsel %vm1659, 0, %v1745
      %v1748 = vcosq.f32.pop %v1746
      %v1749 = vsinq.f32.pop %v1746
      %vm1750 = vweird.f32 %v1258
      %v1751 = vand.u32 %v1747, 3
      %vm1752 = vcmp.lt.s32.totalorder %v1751, 2
      %vm1753 = vcmp.eq.s32.totalorder %v1751, 0
      %v1754 = vxor.u32 %v1749, 2147483648
      %v1755 = vsel %vm1753, %v1748, %v1754
      %vm1756 = vcmp.eq.s32.totalorder %v1751, 2
      %v1757 = vxor.u32 %v1748, 2147483648
      %v1758 = vsel %vm1756, %v1757, %v1749
      %v1759 = vsel %vm1752, %v1755, %v1758
      %v1760 = vsel %vm1750, nan, %v1759
      %v1761 = vand.u32 2147483647, %v1264
      %vm1762 = vcmp.le.f32.partialorder %v1761, 0.7853982
      %vm1763 = vcmp.lt.s32.totalorder %v1264, 0
      %v1764 = vand.u32 %v1264, 2139095040
      %v1765 = vshrl.u32 %v1764, 23
      %v1766 = vsub.s32 %v1765, 127
      %v1767 = vand.u32 2147483647, %v1264
      %v1768 = vand.u32 %v1767, 8388607
      %v1769 = vor.u32 %v1768, 8388608
      %v1770 = vsub.s32 0, %v1769
      %v1771 = vadd.s32 %v1766, 1
      %vm1772 = vcmp.gt.s32.totalorder %v1771, 0
      %v1773 = vsel %vm1772, %v1771, 0
      %v1774 = vshrl.u32 %v1773, 5
      %v1775 = vand.u32 %v1773, 31
      %v1776 = vsub.s32 32, %v1775
      %v1777 = vshrl.u32 683565275, %v1776
      %v1778 = vshll.u32 683565275, %v1775
      %v1779 = vshrl.u32 2475754826, %v1776
      %v1780 = vor.u32 %v1778, %v1779
      %v1781 = vshll.u32 2475754826, %v1775
      %v1782 = vshrl.u32 2131351028, %v1776
      %v1783 = vor.u32 %v1781, %v1782
      %v1784 = vshll.u32 2131351028, %v1775
      %v1785 = vshrl.u32 2102212464, %v1776
      %v1786 = vor.u32 %v1784, %v1785
      %v1787 = vshll.u32 2102212464, %v1775
      %v1788 = vshrl.u32 920167782, %v1776
      %v1789 = vor.u32 %v1787, %v1788
      %v1790 = vshll.u32 920167782, %v1775
      %v1791 = vshrl.u32 1326507024, %v1776
      %v1792 = vor.u32 %v1790, %v1791
      %vm1793 = vcmp.lt.s32.totalorder %v1774, 1
      %vm1794 = vcmp.lt.s32.totalorder %v1774, 2
      %vm1795 = vcmp.lt.s32.totalorder %v1774, 3
      %vm1796 = vcmp.lt.s32.totalorder %v1774, 4
      %v1797 = vsel %vm1793, %v1777, %v1780
      %v1798 = vsel %vm1796, %v1786, 2102212464
      %v1799 = vsel %vm1795, %v1783, %v1798
      %v1800 = vsel %vm1794, %v1797, %v1799
      %v1801 = vsel %vm1793, %v1780, %v1783
      %v1802 = vsel %vm1796, %v1789, 920167782
      %v1803 = vsel %vm1795, %v1786, %v1802
      %v1804 = vsel %vm1794, %v1801, %v1803
      %v1805 = vsel %vm1793, %v1783, %v1786
      %v1806 = vsel %vm1796, %v1792, 1326507024
      %v1807 = vsel %vm1795, %v1789, %v1806
      %v1808 = vsel %vm1794, %v1805, %v1807
      %v1809 = vshll.u32 %v1769, 8
      %v1810 = vmul.u32.u64.compose %v1809, %v1808
      %v1811 = vextract.low.u32 %v1810
      %v1812 = vextract.high.u32 %v1810
      %v1813 = vmul.u32.u64.compose %v1809, %v1804
      %v1814 = vextract.low.u32 %v1813
      %v1815 = vextract.high.u32 %v1813
      %v1816 = vmul.u32 %v1809, %v1800
      %v1817 = vadd.s32 %v1812, %v1814
      %vm1818 = vc.u32 %v1812, %v1814
      %v1819 = vadd.s32 %v1815, 1
      %v1820 = vsel %vm1818, %v1819, %v1815
      %v1821 = vadd.s32 %v1816, %v1820
      %v1822 = vadd.s32 %v1821, 536870912
      %v1823 = vshrl.u32 %v1822, 30
      %v1824 = vshll.u32 %v1823, 30
      %v1825 = vsub.s32 %v1821, %v1824
      %vm1826 = vcmp.lt.s32.totalorder %v1825, 0
      %v1827 = vsub.s32 0, %v1825
      %v1828 = vsel %vm1826, %v1827, %v1825
      %v1829 = vclz %v1828
      %v1830 = vsub.s32 %v1829, 2
      %vm1831 = vcmp.gt.s32.totalorder 0, %v1830
      %v1832 = vsel %vm1831, 0, %v1830
      %v1833 = vsub.s32 32, %v1832
      %v1834 = vshll.u32 %v1825, %v1832
      %v1835 = vshrl.u32 %v1817, %v1833
      %v1836 = vor.u32 %v1834, %v1835
      %v1837 = vsub.s32 4294967266, %v1832
      %v1838 = vadd.s32 %v1837, 127
      %v1839 = vshll.u32 %v1838, 23
      %v1840 = vor.u32 4788187, %v1839
      %v1841 = vand.u32 2147483647, %v1840
      %v1843 = vcvt.s32.f32 %v1836
      %v1844 = vmul.f32 %v1843, %v1841
      %v1845 = vxor.u32 %v1844, 2147483648
      %v1846 = vsel %vm1763, %v1845, %v1844
      %v1847 = vsub.s32 4, %v1823
      %v1848 = vsel %vm1763, %v1847, %v1823
      %v1849 = vsel %vm1762, %v1264, %v1846
      %v1850 = vsel %vm1762, 0, %v1848
      %v1851 = vcosq.f32.pop %v1849
      %v1852 = vsinq.f32.pop %v1849
      %vm1853 = vweird.f32 %v1264
      %v1854 = vand.u32 %v1850, 3
      %vm1855 = vcmp.lt.s32.totalorder %v1854, 2
      %vm1856 = vcmp.eq.s32.totalorder %v1854, 0
      %v1857 = vxor.u32 %v1852, 2147483648
      %v1858 = vsel %vm1856, %v1851, %v1857
      %vm1859 = vcmp.eq.s32.totalorder %v1854, 2
      %v1860 = vxor.u32 %v1851, 2147483648
      %v1861 = vsel %vm1859, %v1860, %v1852
      %v1862 = vsel %vm1855, %v1858, %v1861
      %v1863 = vsel %vm1853, nan, %v1862
      %v1864 = vand.u32 2147483647, %v1270
      %vm1865 = vcmp.le.f32.partialorder %v1864, 0.7853982
      %vm1866 = vcmp.lt.s32.totalorder %v1270, 0
      %v1867 = vand.u32 %v1270, 2139095040
      %v1868 = vshrl.u32 %v1867, 23
      %v1869 = vsub.s32 %v1868, 127
      %v1870 = vand.u32 2147483647, %v1270
      %v1871 = vand.u32 %v1870, 8388607
      %v1872 = vor.u32 %v1871, 8388608
      %v1873 = vsub.s32 0, %v1872
      %v1874 = vadd.s32 %v1869, 1
      %vm1875 = vcmp.gt.s32.totalorder %v1874, 0
      %v1876 = vsel %vm1875, %v1874, 0
      %v1877 = vshrl.u32 %v1876, 5
      %v1878 = vand.u32 %v1876, 31
      %v1879 = vsub.s32 32, %v1878
      %v1880 = vshrl.u32 683565275, %v1879
      %v1881 = vshll.u32 683565275, %v1878
      %v1882 = vshrl.u32 2475754826, %v1879
      %v1883 = vor.u32 %v1881, %v1882
      %v1884 = vshll.u32 2475754826, %v1878
      %v1885 = vshrl.u32 2131351028, %v1879
      %v1886 = vor.u32 %v1884, %v1885
      %v1887 = vshll.u32 2131351028, %v1878
      %v1888 = vshrl.u32 2102212464, %v1879
      %v1889 = vor.u32 %v1887, %v1888
      %v1890 = vshll.u32 2102212464, %v1878
      %v1891 = vshrl.u32 920167782, %v1879
      %v1892 = vor.u32 %v1890, %v1891
      %v1893 = vshll.u32 920167782, %v1878
      %v1894 = vshrl.u32 1326507024, %v1879
      %v1895 = vor.u32 %v1893, %v1894
      %vm1896 = vcmp.lt.s32.totalorder %v1877, 1
      %vm1897 = vcmp.lt.s32.totalorder %v1877, 2
      %vm1898 = vcmp.lt.s32.totalorder %v1877, 3
      %vm1899 = vcmp.lt.s32.totalorder %v1877, 4
      %v1900 = vsel %vm1896, %v1880, %v1883
      %v1901 = vsel %vm1899, %v1889, 2102212464
      %v1902 = vsel %vm1898, %v1886, %v1901
      %v1903 = vsel %vm1897, %v1900, %v1902
      %v1904 = vsel %vm1896, %v1883, %v1886
      %v1905 = vsel %vm1899, %v1892, 920167782
      %v1906 = vsel %vm1898, %v1889, %v1905
      %v1907 = vsel %vm1897, %v1904, %v1906
      %v1908 = vsel %vm1896, %v1886, %v1889
      %v1909 = vsel %vm1899, %v1895, 1326507024
      %v1910 = vsel %vm1898, %v1892, %v1909
      %v1911 = vsel %vm1897, %v1908, %v1910
      %v1912 = vshll.u32 %v1872, 8
      %v1913 = vmul.u32.u64.compose %v1912, %v1911
      %v1914 = vextract.low.u32 %v1913
      %v1915 = vextract.high.u32 %v1913
      %v1916 = vmul.u32.u64.compose %v1912, %v1907
      %v1917 = vextract.low.u32 %v1916
      %v1918 = vextract.high.u32 %v1916
      %v1919 = vmul.u32 %v1912, %v1903
      %v1920 = vadd.s32 %v1915, %v1917
      %vm1921 = vc.u32 %v1915, %v1917
      %v1922 = vadd.s32 %v1918, 1
      %v1923 = vsel %vm1921, %v1922, %v1918
      %v1924 = vadd.s32 %v1919, %v1923
      %v1925 = vadd.s32 %v1924, 536870912
      %v1926 = vshrl.u32 %v1925, 30
      %v1927 = vshll.u32 %v1926, 30
      %v1928 = vsub.s32 %v1924, %v1927
      %vm1929 = vcmp.lt.s32.totalorder %v1928, 0
      %v1930 = vsub.s32 0, %v1928
      %v1931 = vsel %vm1929, %v1930, %v1928
      %v1932 = vclz %v1931
      %v1933 = vsub.s32 %v1932, 2
      %vm1934 = vcmp.gt.s32.totalorder 0, %v1933
      %v1935 = vsel %vm1934, 0, %v1933
      %v1936 = vsub.s32 32, %v1935
      %v1937 = vshll.u32 %v1928, %v1935
      %v1938 = vshrl.u32 %v1920, %v1936
      %v1939 = vor.u32 %v1937, %v1938
      %v1940 = vsub.s32 4294967266, %v1935
      %v1941 = vadd.s32 %v1940, 127
      %v1942 = vshll.u32 %v1941, 23
      %v1943 = vor.u32 4788187, %v1942
      %v1944 = vand.u32 2147483647, %v1943
      %v1946 = vcvt.s32.f32 %v1939
      %v1947 = vmul.f32 %v1946, %v1944
      %v1948 = vxor.u32 %v1947, 2147483648
      %v1949 = vsel %vm1866, %v1948, %v1947
      %v1950 = vsub.s32 4, %v1926
      %v1951 = vsel %vm1866, %v1950, %v1926
      %v1952 = vsel %vm1865, %v1270, %v1949
      %v1953 = vsel %vm1865, 0, %v1951
      %v1954 = vcosq.f32.pop %v1952
      %v1955 = vsinq.f32.pop %v1952
      %vm1956 = vweird.f32 %v1270
      %v1957 = vand.u32 %v1953, 3
      %vm1958 = vcmp.lt.s32.totalorder %v1957, 2
      %vm1959 = vcmp.eq.s32.totalorder %v1957, 0
      %v1960 = vxor.u32 %v1955, 2147483648
      %v1961 = vsel %vm1959, %v1954, %v1960
      %vm1962 = vcmp.eq.s32.totalorder %v1957, 2
      %v1963 = vxor.u32 %v1954, 2147483648
      %v1964 = vsel %vm1962, %v1963, %v1955
      %v1965 = vsel %vm1958, %v1961, %v1964
      %v1966 = vsel %vm1956, nan, %v1965
      %v1967 = vand.u32 2147483647, %v1276
      %vm1968 = vcmp.le.f32.partialorder %v1967, 0.7853982
      %vm1969 = vcmp.lt.s32.totalorder %v1276, 0
      %v1970 = vand.u32 %v1276, 2139095040
      %v1971 = vshrl.u32 %v1970, 23
      %v1972 = vsub.s32 %v1971, 127
      %v1973 = vand.u32 2147483647, %v1276
      %v1974 = vand.u32 %v1973, 8388607
      %v1975 = vor.u32 %v1974, 8388608
      %v1976 = vsub.s32 0, %v1975
      %v1977 = vadd.s32 %v1972, 1
      %vm1978 = vcmp.gt.s32.totalorder %v1977, 0
      %v1979 = vsel %vm1978, %v1977, 0
      %v1980 = vshrl.u32 %v1979, 5
      %v1981 = vand.u32 %v1979, 31
      %v1982 = vsub.s32 32, %v1981
      %v1983 = vshrl.u32 683565275, %v1982
      %v1984 = vshll.u32 683565275, %v1981
      %v1985 = vshrl.u32 2475754826, %v1982
      %v1986 = vor.u32 %v1984, %v1985
      %v1987 = vshll.u32 2475754826, %v1981
      %v1988 = vshrl.u32 2131351028, %v1982
      %v1989 = vor.u32 %v1987, %v1988
      %v1990 = vshll.u32 2131351028, %v1981
      %v1991 = vshrl.u32 2102212464, %v1982
      %v1992 = vor.u32 %v1990, %v1991
      %v1993 = vshll.u32 2102212464, %v1981
      %v1994 = vshrl.u32 920167782, %v1982
      %v1995 = vor.u32 %v1993, %v1994
      %v1996 = vshll.u32 920167782, %v1981
      %v1997 = vshrl.u32 1326507024, %v1982
      %v1998 = vor.u32 %v1996, %v1997
      %vm1999 = vcmp.lt.s32.totalorder %v1980, 1
      %vm2000 = vcmp.lt.s32.totalorder %v1980, 2
      %vm2001 = vcmp.lt.s32.totalorder %v1980, 3
      %vm2002 = vcmp.lt.s32.totalorder %v1980, 4
      %v2003 = vsel %vm1999, %v1983, %v1986
      %v2004 = vsel %vm2002, %v1992, 2102212464
      %v2005 = vsel %vm2001, %v1989, %v2004
      %v2006 = vsel %vm2000, %v2003, %v2005
      %v2007 = vsel %vm1999, %v1986, %v1989
      %v2008 = vsel %vm2002, %v1995, 920167782
      %v2009 = vsel %vm2001, %v1992, %v2008
      %v2010 = vsel %vm2000, %v2007, %v2009
      %v2011 = vsel %vm1999, %v1989, %v1992
      %v2012 = vsel %vm2002, %v1998, 1326507024
      %v2013 = vsel %vm2001, %v1995, %v2012
      %v2014 = vsel %vm2000, %v2011, %v2013
      %v2015 = vshll.u32 %v1975, 8
      %v2016 = vmul.u32.u64.compose %v2015, %v2014
      %v2017 = vextract.low.u32 %v2016
      %v2018 = vextract.high.u32 %v2016
      %v2019 = vmul.u32.u64.compose %v2015, %v2010
      %v2020 = vextract.low.u32 %v2019
      %v2021 = vextract.high.u32 %v2019
      %v2022 = vmul.u32 %v2015, %v2006
      %v2023 = vadd.s32 %v2018, %v2020
      %vm2024 = vc.u32 %v2018, %v2020
      %v2025 = vadd.s32 %v2021, 1
      %v2026 = vsel %vm2024, %v2025, %v2021
      %v2027 = vadd.s32 %v2022, %v2026
      %v2028 = vadd.s32 %v2027, 536870912
      %v2029 = vshrl.u32 %v2028, 30
      %v2030 = vshll.u32 %v2029, 30
      %v2031 = vsub.s32 %v2027, %v2030
      %vm2032 = vcmp.lt.s32.totalorder %v2031, 0
      %v2033 = vsub.s32 0, %v2031
      %v2034 = vsel %vm2032, %v2033, %v2031
      %v2035 = vclz %v2034
      %v2036 = vsub.s32 %v2035, 2
      %vm2037 = vcmp.gt.s32.totalorder 0, %v2036
      %v2038 = vsel %vm2037, 0, %v2036
      %v2039 = vsub.s32 32, %v2038
      %v2040 = vshll.u32 %v2031, %v2038
      %v2041 = vshrl.u32 %v2023, %v2039
      %v2042 = vor.u32 %v2040, %v2041
      %v2043 = vsub.s32 4294967266, %v2038
      %v2044 = vadd.s32 %v2043, 127
      %v2045 = vshll.u32 %v2044, 23
      %v2046 = vor.u32 4788187, %v2045
      %v2047 = vand.u32 2147483647, %v2046
      %v2049 = vcvt.s32.f32 %v2042
      %v2050 = vmul.f32 %v2049, %v2047
      %v2051 = vxor.u32 %v2050, 2147483648
      %v2052 = vsel %vm1969, %v2051, %v2050
      %v2053 = vsub.s32 4, %v2029
      %v2054 = vsel %vm1969, %v2053, %v2029
      %v2055 = vsel %vm1968, %v1276, %v2052
      %v2056 = vsel %vm1968, 0, %v2054
      %v2057 = vcosq.f32.pop %v2055
      %v2058 = vsinq.f32.pop %v2055
      %vm2059 = vweird.f32 %v1276
      %v2060 = vand.u32 %v2056, 3
      %vm2061 = vcmp.lt.s32.totalorder %v2060, 2
      %vm2062 = vcmp.eq.s32.totalorder %v2060, 0
      %v2063 = vxor.u32 %v2058, 2147483648
      %v2064 = vsel %vm2062, %v2057, %v2063
      %vm2065 = vcmp.eq.s32.totalorder %v2060, 2
      %v2066 = vxor.u32 %v2057, 2147483648
      %v2067 = vsel %vm2065, %v2066, %v2058
      %v2068 = vsel %vm2061, %v2064, %v2067
      %v2069 = vsel %vm2059, nan, %v2068
      %v2070 = vand.u32 2147483647, %v1282
      %vm2071 = vcmp.le.f32.partialorder %v2070, 0.7853982
      %vm2072 = vcmp.lt.s32.totalorder %v1282, 0
      %v2073 = vand.u32 %v1282, 2139095040
      %v2074 = vshrl.u32 %v2073, 23
      %v2075 = vsub.s32 %v2074, 127
      %v2076 = vand.u32 2147483647, %v1282
      %v2077 = vand.u32 %v2076, 8388607
      %v2078 = vor.u32 %v2077, 8388608
      %v2079 = vsub.s32 0, %v2078
      %v2080 = vadd.s32 %v2075, 1
      %vm2081 = vcmp.gt.s32.totalorder %v2080, 0
      %v2082 = vsel %vm2081, %v2080, 0
      %v2083 = vshrl.u32 %v2082, 5
      %v2084 = vand.u32 %v2082, 31
      %v2085 = vsub.s32 32, %v2084
      %v2086 = vshrl.u32 683565275, %v2085
      %v2087 = vshll.u32 683565275, %v2084
      %v2088 = vshrl.u32 2475754826, %v2085
      %v2089 = vor.u32 %v2087, %v2088
      %v2090 = vshll.u32 2475754826, %v2084
      %v2091 = vshrl.u32 2131351028, %v2085
      %v2092 = vor.u32 %v2090, %v2091
      %v2093 = vshll.u32 2131351028, %v2084
      %v2094 = vshrl.u32 2102212464, %v2085
      %v2095 = vor.u32 %v2093, %v2094
      %v2096 = vshll.u32 2102212464, %v2084
      %v2097 = vshrl.u32 920167782, %v2085
      %v2098 = vor.u32 %v2096, %v2097
      %v2099 = vshll.u32 920167782, %v2084
      %v2100 = vshrl.u32 1326507024, %v2085
      %v2101 = vor.u32 %v2099, %v2100
      %vm2102 = vcmp.lt.s32.totalorder %v2083, 1
      %vm2103 = vcmp.lt.s32.totalorder %v2083, 2
      %vm2104 = vcmp.lt.s32.totalorder %v2083, 3
      %vm2105 = vcmp.lt.s32.totalorder %v2083, 4
      %v2106 = vsel %vm2102, %v2086, %v2089
      %v2107 = vsel %vm2105, %v2095, 2102212464
      %v2108 = vsel %vm2104, %v2092, %v2107
      %v2109 = vsel %vm2103, %v2106, %v2108
      %v2110 = vsel %vm2102, %v2089, %v2092
      %v2111 = vsel %vm2105, %v2098, 920167782
      %v2112 = vsel %vm2104, %v2095, %v2111
      %v2113 = vsel %vm2103, %v2110, %v2112
      %v2114 = vsel %vm2102, %v2092, %v2095
      %v2115 = vsel %vm2105, %v2101, 1326507024
      %v2116 = vsel %vm2104, %v2098, %v2115
      %v2117 = vsel %vm2103, %v2114, %v2116
      %v2118 = vshll.u32 %v2078, 8
      %v2119 = vmul.u32.u64.compose %v2118, %v2117
      %v2120 = vextract.low.u32 %v2119
      %v2121 = vextract.high.u32 %v2119
      %v2122 = vmul.u32.u64.compose %v2118, %v2113
      %v2123 = vextract.low.u32 %v2122
      %v2124 = vextract.high.u32 %v2122
      %v2125 = vmul.u32 %v2118, %v2109
      %v2126 = vadd.s32 %v2121, %v2123
      %vm2127 = vc.u32 %v2121, %v2123
      %v2128 = vadd.s32 %v2124, 1
      %v2129 = vsel %vm2127, %v2128, %v2124
      %v2130 = vadd.s32 %v2125, %v2129
      %v2131 = vadd.s32 %v2130, 536870912
      %v2132 = vshrl.u32 %v2131, 30
      %v2133 = vshll.u32 %v2132, 30
      %v2134 = vsub.s32 %v2130, %v2133
      %vm2135 = vcmp.lt.s32.totalorder %v2134, 0
      %v2136 = vsub.s32 0, %v2134
      %v2137 = vsel %vm2135, %v2136, %v2134
      %v2138 = vclz %v2137
      %v2139 = vsub.s32 %v2138, 2
      %vm2140 = vcmp.gt.s32.totalorder 0, %v2139
      %v2141 = vsel %vm2140, 0, %v2139
      %v2142 = vsub.s32 32, %v2141
      %v2143 = vshll.u32 %v2134, %v2141
      %v2144 = vshrl.u32 %v2126, %v2142
      %v2145 = vor.u32 %v2143, %v2144
      %v2146 = vsub.s32 4294967266, %v2141
      %v2147 = vadd.s32 %v2146, 127
      %v2148 = vshll.u32 %v2147, 23
      %v2149 = vor.u32 4788187, %v2148
      %v2150 = vand.u32 2147483647, %v2149
      %v2152 = vcvt.s32.f32 %v2145
      %v2153 = vmul.f32 %v2152, %v2150
      %v2154 = vxor.u32 %v2153, 2147483648
      %v2155 = vsel %vm2072, %v2154, %v2153
      %v2156 = vsub.s32 4, %v2132
      %v2157 = vsel %vm2072, %v2156, %v2132
      %v2158 = vsel %vm2071, %v1282, %v2155
      %v2159 = vsel %vm2071, 0, %v2157
      %v2160 = vcosq.f32.pop %v2158
      %v2161 = vsinq.f32.pop %v2158
      %vm2162 = vweird.f32 %v1282
      %v2163 = vand.u32 %v2159, 3
      %vm2164 = vcmp.lt.s32.totalorder %v2163, 2
      %vm2165 = vcmp.eq.s32.totalorder %v2163, 0
      %v2166 = vxor.u32 %v2161, 2147483648
      %v2167 = vsel %vm2165, %v2160, %v2166
      %vm2168 = vcmp.eq.s32.totalorder %v2163, 2
      %v2169 = vxor.u32 %v2160, 2147483648
      %v2170 = vsel %vm2168, %v2169, %v2161
      %v2171 = vsel %vm2164, %v2167, %v2170
      %v2172 = vsel %vm2162, nan, %v2171
      %2181 = vrot.lane.b32.xlu0 %v1451, 96
      %v2182 = vpop.permute.xlu0 %2181
      %2183 = vrot.lane.b32.xlu0 %v1554, 96
      %v2184 = vpop.permute.xlu0 %2183
      %2185 = vrot.lane.b32.xlu0 %v1657, 96
      %v2186 = vpop.permute.xlu0 %2185
      %2187 = vrot.lane.b32.xlu0 %v1760, 96
      %v2188 = vpop.permute.xlu0 %2187
      %2189 = vrot.lane.b32.xlu0 %v1863, 96
      %v2190 = vpop.permute.xlu0 %2189
      %2191 = vrot.lane.b32.xlu0 %v1966, 96
      %v2192 = vpop.permute.xlu0 %2191
      %2193 = vrot.lane.b32.xlu0 %v2069, 96
      %v2194 = vpop.permute.xlu0 %2193
      %2195 = vrot.lane.b32.xlu0 %v2172, 96
      %v2196 = vpop.permute.xlu0 %2195
      %v2205 = vmul.f32 %v1334, %v2182
      %v2206 = vmul.f32 %v1336, %v2184
      %v2207 = vmul.f32 %v1338, %v2186
      %v2208 = vmul.f32 %v1340, %v2188
      %v2209 = vmul.f32 %v1342, %v2190
      %v2210 = vmul.f32 %v1344, %v2192
      %v2211 = vmul.f32 %v1346, %v2194
      %v2212 = vmul.f32 %v1348, %v2196
      %2221 = vrot.lane.b32.xlu0 %v2205, 96
      %v2222 = vpop.permute.xlu0 %2221
      %2223 = vrot.lane.b32.xlu0 %v2206, 96
      %v2224 = vpop.permute.xlu0 %2223
      %2225 = vrot.lane.b32.xlu0 %v2207, 96
      %v2226 = vpop.permute.xlu0 %2225
      %2227 = vrot.lane.b32.xlu0 %v2208, 96
      %v2228 = vpop.permute.xlu0 %2227
      %2229 = vrot.lane.b32.xlu0 %v2209, 96
      %v2230 = vpop.permute.xlu0 %2229
      %2231 = vrot.lane.b32.xlu0 %v2210, 96
      %v2232 = vpop.permute.xlu0 %2231
      %2233 = vrot.lane.b32.xlu0 %v2211, 96
      %v2234 = vpop.permute.xlu0 %2233
      %2235 = vrot.lane.b32.xlu0 %v2212, 96
      %v2236 = vpop.permute.xlu0 %2235
      %v2245 = vsub.f32 %v1240, %v2222
      %v2246 = vsub.f32 %v1246, %v2224
      %v2247 = vsub.f32 %v1252, %v2226
      %v2248 = vsub.f32 %v1258, %v2228
      %v2249 = vsub.f32 %v1264, %v2230
      %v2250 = vsub.f32 %v1270, %v2232
      %v2251 = vsub.f32 %v1276, %v2234
      %v2252 = vsub.f32 %v1282, %v2236
      %2261 = vrot.lane.b32.xlu0 %v2245, 96
      %v2262 = vpop.permute.xlu0 %2261
      %2263 = vrot.lane.b32.xlu0 %v2246, 96
      %v2264 = vpop.permute.xlu0 %2263
      %2265 = vrot.lane.b32.xlu0 %v2247, 96
      %v2266 = vpop.permute.xlu0 %2265
      %2267 = vrot.lane.b32.xlu0 %v2248, 96
      %v2268 = vpop.permute.xlu0 %2267
      %2269 = vrot.lane.b32.xlu0 %v2249, 96
      %v2270 = vpop.permute.xlu0 %2269
      %2271 = vrot.lane.b32.xlu0 %v2250, 96
      %v2272 = vpop.permute.xlu0 %2271
      %2273 = vrot.lane.b32.xlu0 %v2251, 96
      %v2274 = vpop.permute.xlu0 %2273
      %2275 = vrot.lane.b32.xlu0 %v2252, 96
      %v2276 = vpop.permute.xlu0 %2275
      %v2285 = vmul.f32 %v1318, %v2262
      %v2286 = vmul.f32 %v1320, %v2264
      %v2287 = vmul.f32 %v1322, %v2266
      %v2288 = vmul.f32 %v1324, %v2268
      %v2289 = vmul.f32 %v1326, %v2270
      %v2290 = vmul.f32 %v1328, %v2272
      %v2291 = vmul.f32 %v1330, %v2274
      %v2292 = vmul.f32 %v1332, %v2276
      %2301 = vrot.lane.b32.xlu0 %v2285, 64
      %v2302 = vpop.permute.xlu0 %2301
      %2303 = vrot.lane.b32.xlu0 %v2286, 64
      %v2304 = vpop.permute.xlu0 %2303
      %2305 = vrot.lane.b32.xlu0 %v2287, 64
      %v2306 = vpop.permute.xlu0 %2305
      %2307 = vrot.lane.b32.xlu0 %v2288, 64
      %v2308 = vpop.permute.xlu0 %2307
      %2309 = vrot.lane.b32.xlu0 %v2289, 64
      %v2310 = vpop.permute.xlu0 %2309
      %2311 = vrot.lane.b32.xlu0 %v2290, 64
      %v2312 = vpop.permute.xlu0 %2311
      %2313 = vrot.lane.b32.xlu0 %v2291, 64
      %v2314 = vpop.permute.xlu0 %2313
      %2315 = vrot.lane.b32.xlu0 %v2292, 64
      %v2316 = vpop.permute.xlu0 %2315
      %v2325 = vadd.f32 %v2205, %v2302
      %v2326 = vadd.f32 %v2206, %v2304
      %v2327 = vadd.f32 %v2207, %v2306
      %v2328 = vadd.f32 %v2208, %v2308
      %v2329 = vadd.f32 %v2209, %v2310
      %v2330 = vadd.f32 %v2210, %v2312
      %v2331 = vadd.f32 %v2211, %v2314
      %v2332 = vadd.f32 %v2212, %v2316
      %2341 = vrot.lane.b32.xlu0 %v2325, 64
      %v2342 = vpop.permute.xlu0 %2341
      %2343 = vrot.lane.b32.xlu0 %v2326, 64
      %v2344 = vpop.permute.xlu0 %2343
      %2345 = vrot.lane.b32.xlu0 %v2327, 64
      %v2346 = vpop.permute.xlu0 %2345
      %2347 = vrot.lane.b32.xlu0 %v2328, 64
      %v2348 = vpop.permute.xlu0 %2347
      %2349 = vrot.lane.b32.xlu0 %v2329, 64
      %v2350 = vpop.permute.xlu0 %2349
      %2351 = vrot.lane.b32.xlu0 %v2330, 64
      %v2352 = vpop.permute.xlu0 %2351
      %2353 = vrot.lane.b32.xlu0 %v2331, 64
      %v2354 = vpop.permute.xlu0 %2353
      %2355 = vrot.lane.b32.xlu0 %v2332, 64
      %v2356 = vpop.permute.xlu0 %2355
      %2365 = vst.msk [vmem:[%s172] sm:$0xff] %vm352, %v2342
      %2366 = vst.msk [vmem:[%s172 + $0x8] sm:$0xff] %vm352, %v2344
      %2367 = vst.msk [vmem:[%s172 + $0x10] sm:$0xff] %vm352, %v2346
      %2368 = vst.msk [vmem:[%s172 + $0x18] sm:$0xff] %vm352, %v2348
      %2369 = vst.msk [vmem:[%s172 + $0x20] sm:$0xff] %vm352, %v2350
      %2370 = vst.msk [vmem:[%s172 + $0x28] sm:$0xff] %vm352, %v2352
      %2371 = vst.msk [vmem:[%s172 + $0x30] sm:$0xff] %vm352, %v2354
      %2372 = vst.msk [vmem:[%s172 + $0x38] sm:$0xff] %vm352, %v2356
      %s2373 = smul.u32 8, %s14
      %p2374 = scmp.lt.s32.totalorder %s2373, 15
      %s2375 = scalar_select %p2374, %s2373, 15
      %s2376 = smul.addr %s2375, 8
      %s2377 = scalar_lea.vmem %s3, %s2376
      // Predicated region
      $region33: #{tpu_custom_call.1} parent=31 // pred_check
        %p2378 = pneg %p100
      $region34: #{tpu_custom_call.1} parent=31 // pred_check_branch
        %2380 = sbr.rel (%p2378) target = $region36
      $region35: #{tpu_custom_call.1} parent=31 // pred_region
        %s2381 = smul.u32 8, %s14
      $region36: #{tpu_custom_call.1} parent=31 // pred_fallthru
        _
    $region32: #{tpu_custom_call.1} parent=5 // pred_fallthru
      _
    %p2382 = scmp.le.s32.totalorder 2, %s9
    // Predicated region
    $region37: #{tpu_custom_call.1} parent=5 // pred_check
      %p2383 = pneg %p2382
    $region38: #{tpu_custom_call.1} parent=5 // pred_check_branch
      %2385 = sbr.rel (%p2383) target = $region40
    $region39: #{tpu_custom_call.1} parent=5 // pred_region
      %s2386 = ssub.s32 %s9, 2
      // Predicated region
      $region41: #{tpu_custom_call.1} parent=39 // pred_check
        %p2387 = pneg %p106
      $region42: #{tpu_custom_call.1} parent=39 // pred_check_branch
        %2389 = sbr.rel (%p2387) target = $region44
      $region43: #{tpu_custom_call.1} parent=39 // pred_region
        %s2390 = smul.u32 8, %s15
        %p2391 = scmp.lt.s32.totalorder %s2390, 15
        %s2392 = scalar_select %p2391, %s2390, 15
        %s2393 = smul.addr %s2392, 8
        %s2394 = scalar_lea.vmem %s3, %s2393
      $region44: #{tpu_custom_call.1} parent=39 // pred_fallthru
        _
    $region40: #{tpu_custom_call.1} parent=5 // pred_fallthru
      _
  $region6: #{tpu_custom_call.1} parent=0 // loop_footer
    %s13 = sadd.s32 1, %s9
  $region7: #{tpu_custom_call.1} parent=0 // loop_footer_branch
    %8 = sbr.rel target = $region3
  $region8: #{tpu_custom_call.1} parent=0 // loop_exit
    _

</llo_original>
